<compile_context>
chip_gen: v7x
topology: tpu7x:2x2x1
jax: 0.10.0
libtpu: 0.0.40
codegen_flags: <defaults>
</compile_context>

<pallas_src>
import jax
import jax.numpy as jnp
from jax.experimental import pallas as pl
from jax.experimental.pallas import tpu as pltpu


# ------------------------------ Pallas kernel --------------------------------
def attention_decode_kernel(
    prenet_ref,   # [1, Bp, P]      per-step prenet (tiled over the step grid axis)
    state0_ref,   # [Bp, OUT]       packed initial state [ctx | h | c | aw | awc | 0]
    mem_ref,      # [Bp, T, E]      encoded text (VMEM-resident across steps)
    pre_ref,      # [Bp, T, A]      processed memory + fused biases (resident)
    w_lstm_ref,   # [P+E+R, 4R]     fused LSTM input weight (resident)
    w_q_ref,      # [R, A]          query projection weight (resident)
    wl_ref,       # [2K, A]         conv (x) lso tap weights (resident)
    w_out_ref,    # [1, A]          attention-output weight (resident)
    b_ref,        # [1, 4R]         fused LSTM bias (resident)
    out_ref,      # [1, Bp, OUT]    packed per-step output [ctx | h | c | alpha | cum | 0]
    h_s, c_s, ctx_s, aw_s, awc_s,   # persistent VMEM state scratch
):
    Bp, T, E = mem_ref.shape
    A = pre_ref.shape[2]
    R = h_s.shape[1]
    K = wl_ref.shape[0] // 2
    pk = K // 2                      # assumes odd kernel (Tacotron K = 5 / 31)
    OUT = out_ref.shape[2]

    # ---- step 0: load initial recurrent state into persistent scratch -------
    @pl.when(pl.program_id(0) == 0)
    def _init():
        ctx_s[...] = state0_ref[:, 0:E]
        h_s[...] = state0_ref[:, E:E + R]
        c_s[...] = state0_ref[:, E + R:E + 2 * R]
        aw_s[...] = jnp.zeros_like(aw_s)          # zero-padded borders for the conv
        awc_s[...] = jnp.zeros_like(awc_s)
        aw_s[:, pk:pk + T] = state0_ref[:, E + 2 * R:E + 2 * R + T]
        awc_s[:, pk:pk + T] = state0_ref[:, E + 2 * R + T:E + 2 * R + 2 * T]

    # ---- attention_rnn: LSTMCell, one fused MXU matmul -----------------------
    x = jnp.concatenate([prenet_ref[0], ctx_s[...], h_s[...]], axis=1)   # [Bp, P+E+R]
    gates = jnp.dot(x, w_lstm_ref[...], preferred_element_type=jnp.float32) + b_ref[...]
    # TODO(synk): if ever compute-bound, repack W_lstm so each gate is 128-lane aligned.
    i_g = jax.nn.sigmoid(gates[:, 0:R])
    f_g = jax.nn.sigmoid(gates[:, R:2 * R])
    g_g = jnp.tanh(gates[:, 2 * R:3 * R])
    o_g = jax.nn.sigmoid(gates[:, 3 * R:4 * R])
    c_new = f_g * c_s[...] + i_g * g_g
    h_new = o_g * jnp.tanh(c_new)

    # ---- location conv (+) lso: K shifted-slice FMAs (O(T*A*K), no banded slab)
    wl = wl_ref[...]                                  # [2K, A]
    aw_pad = aw_s[...]                                # [Bp, T + 2*pk] (zero borders)
    awc_pad = awc_s[...]
    loc = jnp.zeros((Bp, T, A), jnp.float32)
    for k in range(K):                                # K is tiny & static
        loc = loc + aw_pad[:, k:k + T][:, :, None] * wl[k:k + 1, None, :]
        loc = loc + awc_pad[:, k:k + T][:, :, None] * wl[K + k:K + k + 1, None, :]

    # ---- query projection: single [Bp, A] matmul, broadcast over T -----------
    q = jnp.dot(h_new, w_q_ref[...], preferred_element_type=jnp.float32)  # [Bp, A]

    # ---- energies: tanh(.) then lane reduce against w_out (b_out is a softmax no-op)
    feats = jnp.tanh(loc + q[:, None, :] + pre_ref[...])                  # [Bp, T, A]
    e = jnp.sum(feats * w_out_ref[...], axis=-1)                          # [Bp, T]

    # ---- softmax over time (exact divide: denominator is only Bp scalars) ----
    m = jnp.max(e, axis=1, keepdims=True)
    ex = jnp.exp(e - m)
    alpha = ex / jnp.sum(ex, axis=1, keepdims=True)                       # [Bp, T]

    # ---- context: batched MXU contraction over T -----------------------------
    context = jnp.einsum('bqt,bte->bqe', alpha[:, None, :], mem_ref[...],
                         preferred_element_type=jnp.float32)[:, 0, :]     # [Bp, E]

    cum = awc_pad[:, pk:pk + T] + alpha                                   # [Bp, T]

    # ---- carry recurrent state in scratch for the next step ------------------
    h_s[...] = h_new
    c_s[...] = c_new
    ctx_s[...] = context
    aw_s[:, pk:pk + T] = alpha
    awc_s[:, pk:pk + T] = cum

    # ---- single lane-dense packed output store --------------------------------
    pieces = [context, h_new, c_new, alpha, cum]
    tail = OUT - (E + 2 * R + 2 * T)
    if tail:
        pieces.append(jnp.zeros((Bp, tail), jnp.float32))
    out_ref[0] = jnp.concatenate(pieces, axis=1)


# ----------------- per-utterance (decode-loop-invariant) packing ---------------
def precompute_invariants(memory, p):
    """Processed memory, fused per-dim biases, fused/stacked weights."""
    B, T, E = memory.shape
    A = p["w_q"].shape[0]
    K = p["conv_w"].shape[2]          # odd K assumed (Tacotron uses 5 / 31)

    # processed memory + every time-invariant per-attention-dim bias
    mem_proj = memory @ p["w_mem"].T + p["b_mem"]                       # [B, T, A]
    b_loc = p["b_lso"] + p["w_lso"] @ p["conv_b"]                       # conv bias through lso
    pre = mem_proj + (b_loc + p["b_q"])[None, None, :]                  # [B, T, A]

    # fused LSTM weight: [prenet | ctx | h] @ W -> gates (i,f,g,o)
    w_lstm = jnp.concatenate([p["w_ih"].T, p["w_hh"].T], axis=0)        # [P+E+R, 4R]
    b_lstm = (p["b_ih"] + p["b_hh"])[None, :]                           # [1, 4R]

    # conv (x) lso tap weights: wl[c*K + k, a] = sum_f conv_w[f,c,k] * w_lso[a,f]
    wl = jnp.einsum("fck,af->cka", p["conv_w"], p["w_lso"]).reshape(2 * K, A)

    return dict(memory=memory, pre=pre, w_lstm=w_lstm, b_lstm=b_lstm,
                wl=wl, w_q_t=p["w_q"].T, w_out=p["w_out"], K=int(K))
    # b_out dropped: adding a constant to every energy is a softmax invariant.


# ------------------------------ decode-loop wrapper ----------------------------
def attention_decode(prenet_seq, ctx0, h0, c0, aw0, awc0, inv):
    """Run S attention decode steps in ONE pallas_call (grid over steps).
    Returns per-step (context, h, c, alpha, cum_alpha), each [S, B, ...]."""
    S, B, P = prenet_seq.shape
    _, T, E = inv["memory"].shape
    A = inv["pre"].shape[2]
    R = h0.shape[1]
    K = inv["K"]
    pk = K // 2

    Bp = max(8, ((B + 7) // 8) * 8)                       # fill vreg sublanes
    OUT = ((E + 2 * R + 2 * T + 127) // 128) * 128        # lane-dense packed slab

    def pad_batch(x):
        return jnp.pad(x, ((0, Bp - x.shape[0]),) + ((0, 0),) * (x.ndim - 1))

    prenet_p = jnp.pad(prenet_seq, ((0, 0), (0, Bp - B), (0, 0)))
    mem_p = pad_batch(inv["memory"])
    pre_p = pad_batch(inv["pre"])

    tail = OUT - (E + 2 * R + 2 * T)
    state_pieces = [ctx0, h0, c0, aw0, awc0]
    if tail:
        state_pieces.append(jnp.zeros((B, tail), jnp.float32))
    state0 = pad_batch(jnp.concatenate(state_pieces, axis=1))           # [Bp, OUT]

    const2 = lambda s: (0, 0)
    const3 = lambda s: (0, 0, 0)

    grid_spec = pltpu.PrefetchScalarGridSpec(
        num_scalar_prefetch=0,
        grid=(S,),
        in_specs=[
            pl.BlockSpec((1, Bp, P), lambda s: (s, 0, 0)),    # per-step prenet
            pl.BlockSpec((Bp, OUT), const2),                  # packed initial state
            pl.BlockSpec((Bp, T, E), const3),                 # memory (resident)
            pl.BlockSpec((Bp, T, A), const3),                 # processed memory (resident)
            pl.BlockSpec(inv["w_lstm"].shape, const2),        # fused LSTM weight
            pl.BlockSpec(inv["w_q_t"].shape, const2),         # query weight
            pl.BlockSpec(inv["wl"].shape, const2),            # conv (x) lso taps
            pl.BlockSpec(inv["w_out"].shape, const2),         # attention-output weight
            pl.BlockSpec(inv["b_lstm"].shape, const2),        # fused LSTM bias
        ],
        out_specs=pl.BlockSpec((1, Bp, OUT), lambda s: (s, 0, 0)),
        scratch_shapes=[
            pltpu.VMEM((Bp, R), jnp.float32),                 # h
            pltpu.VMEM((Bp, R), jnp.float32),                 # c
            pltpu.VMEM((Bp, E), jnp.float32),                 # context
            pltpu.VMEM((Bp, T + 2 * pk), jnp.float32),        # padded attn weights
            pltpu.VMEM((Bp, T + 2 * pk), jnp.float32),        # padded cumulative weights
        ],
    )

    out = pl.pallas_call(
        attention_decode_kernel,
        out_shape=jax.ShapeDtypeStruct((S, Bp, OUT), jnp.float32),
        grid_spec=grid_spec,
        compiler_params=pltpu.CompilerParams(
            dimension_semantics=("arbitrary",),   # steps carry state -> sequential
            vmem_limit_bytes=32 * 1024 * 1024,
        ),
    )(prenet_p, state0, mem_p, pre_p, inv["w_lstm"], inv["w_q_t"],
      inv["wl"], inv["w_out"], inv["b_lstm"])

    out = out[:, :B, :]
    context = out[..., 0:E]
    h = out[..., E:E + R]
    c = out[..., E + R:E + 2 * R]
    alpha = out[..., E + 2 * R:E + 2 * R + T]
    cum = out[..., E + 2 * R + T:E + 2 * R + 2 * T]
    return context, h, c, alpha, cum


# ---------------------------- pure-JAX reference -------------------------------
def attention_reference_step(prenet, ctx, h, c, aw, awc, memory, p):
    K = p["conv_w"].shape[2]
    x = jnp.concatenate([prenet, ctx], axis=1)
    gates = x @ p["w_ih"].T + p["b_ih"] + h @ p["w_hh"].T + p["b_hh"]
    R = h.shape[1]
    i_g = jax.nn.sigmoid(gates[:, 0:R])
    f_g = jax.nn.sigmoid(gates[:, R:2 * R])
    g_g = jnp.tanh(gates[:, 2 * R:3 * R])
    o_g = jax.nn.sigmoid(gates[:, 3 * R:4 * R])
    c_new = f_g * c + i_g * g_g
    h_new = o_g * jnp.tanh(c_new)

    loc_in = jnp.stack([aw, awc], axis=1)                              # [B, 2, T]
    conv = jax.lax.conv_general_dilated(
        loc_in, p["conv_w"], window_strides=(1,),
        padding=[(K // 2, K // 2)],
        dimension_numbers=("NCH", "OIH", "NCH"),
    ) + p["conv_b"][None, :, None]
    loc = jnp.transpose(conv, (0, 2, 1)) @ p["w_lso"].T + p["b_lso"]
    query = (h_new @ p["w_q"].T + p["b_q"])[:, None, :]
    mem_p = memory @ p["w_mem"].T + p["b_mem"]
    e = jnp.squeeze(jnp.tanh(query + mem_p + loc) @ p["w_out"].T + p["b_out"], -1)
    alpha = jax.nn.softmax(e, axis=1)
    context = jnp.einsum("bt,bte->be", alpha, memory)
    return context, h_new, c_new, alpha, awc + alpha


def reference_decode(prenet_seq, ctx, h, c, aw, awc, memory, p):
    outs = []
    for s in range(prenet_seq.shape[0]):
        ctx, h, c, aw, awc = attention_reference_step(
            prenet_seq[s], ctx, h, c, aw, awc, memory, p)
        outs.append((ctx, h, c, aw, awc))
    return tuple(jnp.stack(x) for x in zip(*outs))


# ------------------------------- setup / main ----------------------------------
def init_params(key, P, E, R, A, F, K):
    ks = jax.random.split(key, 16)
    u = lambda k, shape, fan: jax.random.uniform(
        k, shape, jnp.float32, -1.0 / jnp.sqrt(fan), 1.0 / jnp.sqrt(fan))
    return dict(
        w_ih=u(ks[0], (4 * R, P + E), R), w_hh=u(ks[1], (4 * R, R), R),
        b_ih=u(ks[2], (4 * R,), R), b_hh=u(ks[3], (4 * R,), R),
        conv_w=u(ks[4], (F, 2, K), 2 * K), conv_b=u(ks[5], (F,), 2 * K),
        w_lso=u(ks[6], (A, F), F), b_lso=u(ks[7], (A,), F),
        w_q=u(ks[8], (A, R), R), b_q=u(ks[9], (A,), R),
        w_mem=u(ks[10], (A, E), E), b_mem=u(ks[11], (A,), E),
        w_out=u(ks[12], (1, A), A), b_out=u(ks[13], (1,), A),
    )


if __name__ == "__main__":
    # args: prenet_dim=32, encoder_dim=32, attention_rnn_dim=32,
    #       attention_dim=32, locations_filters=16, locations_kernel=5
    B, T, P, E, R, A, F, K = 2, 8, 32, 32, 32, 32, 16, 5
    S = 8   # decode steps (grid axis)

    key = jax.random.PRNGKey(0)
    k_par, k_pre, k_mem, k_ctx, k_h, k_c, k_aw, k_awc = jax.random.split(key, 8)
    params = init_params(k_par, P, E, R, A, F, K)

    prenet_seq = jax.random.normal(k_pre, (S, B, P), jnp.float32)
    memory = jax.random.normal(k_mem, (B, T, E), jnp.float32)        # encoded_text
    ctx0 = jax.random.normal(k_ctx, (B, E), jnp.float32)
    h0 = jax.random.normal(k_h, (B, R), jnp.float32)
    c0 = jax.random.normal(k_c, (B, R), jnp.float32)
    aw0 = jax.nn.softmax(jax.random.normal(k_aw, (B, T), jnp.float32), axis=1)
    awc0 = jax.nn.softmax(jax.random.normal(k_awc, (B, T), jnp.float32), axis=1)

    inv = precompute_invariants(memory, params)                      # once per utterance
    outs = attention_decode(prenet_seq, ctx0, h0, c0, aw0, awc0, inv)
    outs = jax.block_until_ready(outs)

    refs = reference_decode(prenet_seq, ctx0, h0, c0, aw0, awc0, memory, params)
    for o, r in zip(outs, refs):
        assert o.shape == r.shape, "shape mismatch vs reference"
        assert jnp.allclose(o, r, rtol=2e-4, atol=2e-4), "mismatch vs reference"

    print("KERNEL_OK")
</pallas_src>

<mosaic_0001>
module attributes {stable_mosaic.version = 11 : i64} {
  func.func @attention_decode_kernel(%arg0: i32, %arg1: memref<1x8x32xf32, #tpu.memory_space<vmem>>, %arg2: memref<8x128xf32, #tpu.memory_space<vmem>>, %arg3: memref<8x8x32xf32, #tpu.memory_space<vmem>>, %arg4: memref<8x8x32xf32, #tpu.memory_space<vmem>>, %arg5: memref<96x128xf32, #tpu.memory_space<vmem>>, %arg6: memref<32x32xf32, #tpu.memory_space<vmem>>, %arg7: memref<10x32xf32, #tpu.memory_space<vmem>>, %arg8: memref<1x32xf32, #tpu.memory_space<vmem>>, %arg9: memref<1x128xf32, #tpu.memory_space<vmem>>, %arg10: memref<1x8x128xf32, #tpu.memory_space<vmem>>, %arg11: memref<8x32xf32, #tpu.memory_space<vmem>>, %arg12: memref<8x32xf32, #tpu.memory_space<vmem>>, %arg13: memref<8x32xf32, #tpu.memory_space<vmem>>, %arg14: memref<8x12xf32, #tpu.memory_space<vmem>>, %arg15: memref<8x12xf32, #tpu.memory_space<vmem>>) attributes {dimension_semantics = [#tpu.dimension_semantics<arbitrary>], iteration_bounds = array<i64: 8>, scalar_prefetch = 0 : i64, scratch_operands = 5 : i64, tpu.core_type = #tpu.core_type<tc>, window_params = [{transform_indices = @transform_0, window_bounds = array<i64: 1, 8, 32>}, {pipeline_mode = #tpu.pipeline_mode<synchronous>, transform_indices = @transform_1, window_bounds = array<i64: 8, 128>}, {pipeline_mode = #tpu.pipeline_mode<synchronous>, transform_indices = @transform_2, window_bounds = array<i64: 8, 8, 32>}, {pipeline_mode = #tpu.pipeline_mode<synchronous>, transform_indices = @transform_3, window_bounds = array<i64: 8, 8, 32>}, {pipeline_mode = #tpu.pipeline_mode<synchronous>, transform_indices = @transform_4, window_bounds = array<i64: 96, 128>}, {pipeline_mode = #tpu.pipeline_mode<synchronous>, transform_indices = @transform_5, window_bounds = array<i64: 32, 32>}, {pipeline_mode = #tpu.pipeline_mode<synchronous>, transform_indices = @transform_6, window_bounds = array<i64: 10, 32>}, {pipeline_mode = #tpu.pipeline_mode<synchronous>, transform_indices = @transform_7, window_bounds = array<i64: 1, 32>}, {pipeline_mode = #tpu.pipeline_mode<synchronous>, transform_indices = @transform_8, window_bounds = array<i64: 1, 128>}, {transform_indices = @transform_9, window_bounds = array<i64: 1, 8, 128>}]} {
    %c0_i32 = arith.constant 0 : i32
    %0 = arith.cmpi eq, %arg0, %c0_i32 : i32
    %1 = arith.extui %0 : i1 to i32
    %c0_i32_0 = arith.constant 0 : i32
    %2 = arith.cmpi ne, %1, %c0_i32_0 : i32
    scf.if %2 {
      %c0_51 = arith.constant 0 : index
      %c0_52 = arith.constant 0 : index
      %161 = vector.load %arg2[%c0_51, %c0_52] : memref<8x128xf32, #tpu.memory_space<vmem>>, vector<8x32xf32>
      %c0_53 = arith.constant 0 : index
      %c0_54 = arith.constant 0 : index
      %162 = vector.load %arg13[%c0_53, %c0_54] : memref<8x32xf32, #tpu.memory_space<vmem>>, vector<8x32xf32>
      tpu.vector_store %arg13[%c0_53, %c0_54], %161 {strides = array<i32>} : memref<8x32xf32, #tpu.memory_space<vmem>>, vector<8x32xf32>,
      %c0_55 = arith.constant 0 : index
      %c32 = arith.constant 32 : index
      %163 = vector.load %arg2[%c0_55, %c32] : memref<8x128xf32, #tpu.memory_space<vmem>>, vector<8x32xf32>
      %c0_56 = arith.constant 0 : index
      %c0_57 = arith.constant 0 : index
      %164 = vector.load %arg11[%c0_56, %c0_57] : memref<8x32xf32, #tpu.memory_space<vmem>>, vector<8x32xf32>
      tpu.vector_store %arg11[%c0_56, %c0_57], %163 {strides = array<i32>} : memref<8x32xf32, #tpu.memory_space<vmem>>, vector<8x32xf32>,
      %c0_58 = arith.constant 0 : index
      %c64 = arith.constant 64 : index
      %165 = vector.load %arg2[%c0_58, %c64] : memref<8x128xf32, #tpu.memory_space<vmem>>, vector<8x32xf32>
      %c0_59 = arith.constant 0 : index
      %c0_60 = arith.constant 0 : index
      %166 = vector.load %arg12[%c0_59, %c0_60] : memref<8x32xf32, #tpu.memory_space<vmem>>, vector<8x32xf32>
      tpu.vector_store %arg12[%c0_59, %c0_60], %165 {strides = array<i32>} : memref<8x32xf32, #tpu.memory_space<vmem>>, vector<8x32xf32>,
      %cst_61 = arith.constant 0.000000e+00 : f32
      %167 = vector.broadcast %cst_61 : f32 to vector<8x12xf32>
      %c0_62 = arith.constant 0 : index
      %c0_63 = arith.constant 0 : index
      %168 = vector.load %arg14[%c0_62, %c0_63] : memref<8x12xf32, #tpu.memory_space<vmem>>, vector<8x12xf32>
      tpu.vector_store %arg14[%c0_62, %c0_63], %167 {strides = array<i32>} : memref<8x12xf32, #tpu.memory_space<vmem>>, vector<8x12xf32>,
      %cst_64 = arith.constant 0.000000e+00 : f32
      %169 = vector.broadcast %cst_64 : f32 to vector<8x12xf32>
      %c0_65 = arith.constant 0 : index
      %c0_66 = arith.constant 0 : index
      %170 = vector.load %arg15[%c0_65, %c0_66] : memref<8x12xf32, #tpu.memory_space<vmem>>, vector<8x12xf32>
      tpu.vector_store %arg15[%c0_65, %c0_66], %169 {strides = array<i32>} : memref<8x12xf32, #tpu.memory_space<vmem>>, vector<8x12xf32>,
      %c0_67 = arith.constant 0 : index
      %c96 = arith.constant 96 : index
      %171 = vector.load %arg2[%c0_67, %c96] : memref<8x128xf32, #tpu.memory_space<vmem>>, vector<8x8xf32>
      %c0_68 = arith.constant 0 : index
      %c2_69 = arith.constant 2 : index
      %172 = vector.load %arg14[%c0_68, %c2_69] : memref<8x12xf32, #tpu.memory_space<vmem>>, vector<8x8xf32>
      tpu.vector_store %arg14[%c0_68, %c2_69], %171 {strides = array<i32>} : memref<8x12xf32, #tpu.memory_space<vmem>>, vector<8x8xf32>,
      %c0_70 = arith.constant 0 : index
      %c104 = arith.constant 104 : index
      %173 = vector.load %arg2[%c0_70, %c104] : memref<8x128xf32, #tpu.memory_space<vmem>>, vector<8x8xf32>
      %c0_71 = arith.constant 0 : index
      %c2_72 = arith.constant 2 : index
      %174 = vector.load %arg15[%c0_71, %c2_72] : memref<8x12xf32, #tpu.memory_space<vmem>>, vector<8x8xf32>
      tpu.vector_store %arg15[%c0_71, %c2_72], %173 {strides = array<i32>} : memref<8x12xf32, #tpu.memory_space<vmem>>, vector<8x8xf32>,
    } else {
    }
    %c0 = arith.constant 0 : index
    %c0_1 = arith.constant 0 : index
    %c0_2 = arith.constant 0 : index
    %3 = vector.load %arg1[%c0, %c0_1, %c0_2] : memref<1x8x32xf32, #tpu.memory_space<vmem>>, vector<1x8x32xf32>
    %4 = vector.shape_cast %3 : vector<1x8x32xf32> to vector<8x32xf32>
    %c0_3 = arith.constant 0 : index
    %c0_4 = arith.constant 0 : index
    %5 = vector.load %arg13[%c0_3, %c0_4] : memref<8x32xf32, #tpu.memory_space<vmem>>, vector<8x32xf32>
    %c0_5 = arith.constant 0 : index
    %c0_6 = arith.constant 0 : index
    %6 = vector.load %arg11[%c0_5, %c0_6] : memref<8x32xf32, #tpu.memory_space<vmem>>, vector<8x32xf32>
    %7 = tpu.concatenate %4, %5, %6 in 1 : vector<8x32xf32>, vector<8x32xf32>, vector<8x32xf32> -> vector<8x96xf32>
    %c0_7 = arith.constant 0 : index
    %c0_8 = arith.constant 0 : index
    %8 = vector.load %arg5[%c0_7, %c0_8] : memref<96x128xf32, #tpu.memory_space<vmem>>, vector<96x128xf32>
    %cst = arith.constant dense<0.000000e+00> : vector<8x128xf32>
    %9 = tpu.matmul %7, %8, %cst {dimension_numbers = #tpu.dot_dimension_numbers<[1], [0], [0], [1], [0, 0, 1, 1], [], []>} : vector<8x96xf32>, vector<96x128xf32>, vector<8x128xf32> -> vector<8x128xf32>
    %c0_9 = arith.constant 0 : index
    %c0_10 = arith.constant 0 : index
    %10 = vector.load %arg9[%c0_9, %c0_10] : memref<1x128xf32, #tpu.memory_space<vmem>>, vector<1x128xf32>
    %11 = vector.broadcast %10 : vector<1x128xf32> to vector<8x128xf32>
    %12 = arith.addf %9, %11 : vector<8x128xf32>
    %13 = vector.extract_strided_slice %12 {offsets = [0, 0], sizes = [8, 32], strides = [1, 1]} : vector<8x128xf32> to vector<8x32xf32>
    %14 = arith.negf %13 : vector<8x32xf32>
    %15 = math.exp %14 : vector<8x32xf32>
    %cst_11 = arith.constant 1.000000e+00 : f32
    %16 = vector.broadcast %cst_11 : f32 to vector<8x32xf32>
    %17 = arith.addf %16, %15 : vector<8x32xf32>
    %18 = arith.divf %16, %17 : vector<8x32xf32>
    %19 = vector.extract_strided_slice %12 {offsets = [0, 32], sizes = [8, 32], strides = [1, 1]} : vector<8x128xf32> to vector<8x32xf32>
    %20 = arith.negf %19 : vector<8x32xf32>
    %21 = math.exp %20 : vector<8x32xf32>
    %cst_12 = arith.constant 1.000000e+00 : f32
    %22 = vector.broadcast %cst_12 : f32 to vector<8x32xf32>
    %23 = arith.addf %22, %21 : vector<8x32xf32>
    %24 = arith.divf %22, %23 : vector<8x32xf32>
    %25 = vector.extract_strided_slice %12 {offsets = [0, 64], sizes = [8, 32], strides = [1, 1]} : vector<8x128xf32> to vector<8x32xf32>
    %26 = math.tanh %25 : vector<8x32xf32>
    %27 = vector.extract_strided_slice %12 {offsets = [0, 96], sizes = [8, 32], strides = [1, 1]} : vector<8x128xf32> to vector<8x32xf32>
    %28 = arith.negf %27 : vector<8x32xf32>
    %29 = math.exp %28 : vector<8x32xf32>
    %cst_13 = arith.constant 1.000000e+00 : f32
    %30 = vector.broadcast %cst_13 : f32 to vector<8x32xf32>
    %31 = arith.addf %30, %29 : vector<8x32xf32>
    %32 = arith.divf %30, %31 : vector<8x32xf32>
    %c0_14 = arith.constant 0 : index
    %c0_15 = arith.constant 0 : index
    %33 = vector.load %arg12[%c0_14, %c0_15] : memref<8x32xf32, #tpu.memory_space<vmem>>, vector<8x32xf32>
    %34 = arith.mulf %24, %33 : vector<8x32xf32>
    %35 = arith.mulf %18, %26 : vector<8x32xf32>
    %36 = arith.addf %34, %35 : vector<8x32xf32>
    %37 = math.tanh %36 : vector<8x32xf32>
    %38 = arith.mulf %32, %37 : vector<8x32xf32>
    %c0_16 = arith.constant 0 : index
    %c0_17 = arith.constant 0 : index
    %39 = vector.load %arg7[%c0_16, %c0_17] : memref<10x32xf32, #tpu.memory_space<vmem>>, vector<10x32xf32>
    %c0_18 = arith.constant 0 : index
    %c0_19 = arith.constant 0 : index
    %40 = vector.load %arg14[%c0_18, %c0_19] : memref<8x12xf32, #tpu.memory_space<vmem>>, vector<8x12xf32>
    %c0_20 = arith.constant 0 : index
    %c0_21 = arith.constant 0 : index
    %41 = vector.load %arg15[%c0_20, %c0_21] : memref<8x12xf32, #tpu.memory_space<vmem>>, vector<8x12xf32>
    %cst_22 = arith.constant 0.000000e+00 : f32
    %42 = vector.broadcast %cst_22 : f32 to vector<8x8x32xf32>
    %43 = vector.extract_strided_slice %40 {offsets = [0, 0], sizes = [8, 8], strides = [1, 1]} : vector<8x12xf32> to vector<8x8xf32>
    %44 = vector.shape_cast %43 : vector<8x8xf32> to vector<8x8x1xf32>
    %45 = vector.extract_strided_slice %39 {offsets = [0, 0], sizes = [1, 32], strides = [1, 1]} : vector<10x32xf32> to vector<1x32xf32>
    %46 = vector.shape_cast %45 : vector<1x32xf32> to vector<1x1x32xf32>
    %47 = vector.broadcast %44 : vector<8x8x1xf32> to vector<8x8x32xf32>
    %48 = vector.broadcast %46 : vector<1x1x32xf32> to vector<8x8x32xf32>
    %49 = arith.mulf %47, %48 : vector<8x8x32xf32>
    %50 = arith.addf %42, %49 : vector<8x8x32xf32>
    %51 = vector.extract_strided_slice %41 {offsets = [0, 0], sizes = [8, 8], strides = [1, 1]} : vector<8x12xf32> to vector<8x8xf32>
    %52 = vector.shape_cast %51 : vector<8x8xf32> to vector<8x8x1xf32>
    %53 = vector.extract_strided_slice %39 {offsets = [5, 0], sizes = [1, 32], strides = [1, 1]} : vector<10x32xf32> to vector<1x32xf32>
    %54 = vector.shape_cast %53 : vector<1x32xf32> to vector<1x1x32xf32>
    %55 = vector.broadcast %52 : vector<8x8x1xf32> to vector<8x8x32xf32>
    %56 = vector.broadcast %54 : vector<1x1x32xf32> to vector<8x8x32xf32>
    %57 = arith.mulf %55, %56 : vector<8x8x32xf32>
    %58 = arith.addf %50, %57 : vector<8x8x32xf32>
    %59 = vector.extract_strided_slice %40 {offsets = [0, 1], sizes = [8, 8], strides = [1, 1]} : vector<8x12xf32> to vector<8x8xf32>
    %60 = vector.shape_cast %59 : vector<8x8xf32> to vector<8x8x1xf32>
    %61 = vector.extract_strided_slice %39 {offsets = [1, 0], sizes = [1, 32], strides = [1, 1]} : vector<10x32xf32> to vector<1x32xf32>
    %62 = vector.shape_cast %61 : vector<1x32xf32> to vector<1x1x32xf32>
    %63 = vector.broadcast %60 : vector<8x8x1xf32> to vector<8x8x32xf32>
    %64 = vector.broadcast %62 : vector<1x1x32xf32> to vector<8x8x32xf32>
    %65 = arith.mulf %63, %64 : vector<8x8x32xf32>
    %66 = arith.addf %58, %65 : vector<8x8x32xf32>
    %67 = vector.extract_strided_slice %41 {offsets = [0, 1], sizes = [8, 8], strides = [1, 1]} : vector<8x12xf32> to vector<8x8xf32>
    %68 = vector.shape_cast %67 : vector<8x8xf32> to vector<8x8x1xf32>
    %69 = vector.extract_strided_slice %39 {offsets = [6, 0], sizes = [1, 32], strides = [1, 1]} : vector<10x32xf32> to vector<1x32xf32>
    %70 = vector.shape_cast %69 : vector<1x32xf32> to vector<1x1x32xf32>
    %71 = vector.broadcast %68 : vector<8x8x1xf32> to vector<8x8x32xf32>
    %72 = vector.broadcast %70 : vector<1x1x32xf32> to vector<8x8x32xf32>
    %73 = arith.mulf %71, %72 : vector<8x8x32xf32>
    %74 = arith.addf %66, %73 : vector<8x8x32xf32>
    %75 = vector.extract_strided_slice %40 {offsets = [0, 2], sizes = [8, 8], strides = [1, 1]} : vector<8x12xf32> to vector<8x8xf32>
    %76 = vector.shape_cast %75 : vector<8x8xf32> to vector<8x8x1xf32>
    %77 = vector.extract_strided_slice %39 {offsets = [2, 0], sizes = [1, 32], strides = [1, 1]} : vector<10x32xf32> to vector<1x32xf32>
    %78 = vector.shape_cast %77 : vector<1x32xf32> to vector<1x1x32xf32>
    %79 = vector.broadcast %76 : vector<8x8x1xf32> to vector<8x8x32xf32>
    %80 = vector.broadcast %78 : vector<1x1x32xf32> to vector<8x8x32xf32>
    %81 = arith.mulf %79, %80 : vector<8x8x32xf32>
    %82 = arith.addf %74, %81 : vector<8x8x32xf32>
    %83 = vector.extract_strided_slice %41 {offsets = [0, 2], sizes = [8, 8], strides = [1, 1]} : vector<8x12xf32> to vector<8x8xf32>
    %84 = vector.shape_cast %83 : vector<8x8xf32> to vector<8x8x1xf32>
    %85 = vector.extract_strided_slice %39 {offsets = [7, 0], sizes = [1, 32], strides = [1, 1]} : vector<10x32xf32> to vector<1x32xf32>
    %86 = vector.shape_cast %85 : vector<1x32xf32> to vector<1x1x32xf32>
    %87 = vector.broadcast %84 : vector<8x8x1xf32> to vector<8x8x32xf32>
    %88 = vector.broadcast %86 : vector<1x1x32xf32> to vector<8x8x32xf32>
    %89 = arith.mulf %87, %88 : vector<8x8x32xf32>
    %90 = arith.addf %82, %89 : vector<8x8x32xf32>
    %91 = vector.extract_strided_slice %40 {offsets = [0, 3], sizes = [8, 8], strides = [1, 1]} : vector<8x12xf32> to vector<8x8xf32>
    %92 = vector.shape_cast %91 : vector<8x8xf32> to vector<8x8x1xf32>
    %93 = vector.extract_strided_slice %39 {offsets = [3, 0], sizes = [1, 32], strides = [1, 1]} : vector<10x32xf32> to vector<1x32xf32>
    %94 = vector.shape_cast %93 : vector<1x32xf32> to vector<1x1x32xf32>
    %95 = vector.broadcast %92 : vector<8x8x1xf32> to vector<8x8x32xf32>
    %96 = vector.broadcast %94 : vector<1x1x32xf32> to vector<8x8x32xf32>
    %97 = arith.mulf %95, %96 : vector<8x8x32xf32>
    %98 = arith.addf %90, %97 : vector<8x8x32xf32>
    %99 = vector.extract_strided_slice %41 {offsets = [0, 3], sizes = [8, 8], strides = [1, 1]} : vector<8x12xf32> to vector<8x8xf32>
    %100 = vector.shape_cast %99 : vector<8x8xf32> to vector<8x8x1xf32>
    %101 = vector.extract_strided_slice %39 {offsets = [8, 0], sizes = [1, 32], strides = [1, 1]} : vector<10x32xf32> to vector<1x32xf32>
    %102 = vector.shape_cast %101 : vector<1x32xf32> to vector<1x1x32xf32>
    %103 = vector.broadcast %100 : vector<8x8x1xf32> to vector<8x8x32xf32>
    %104 = vector.broadcast %102 : vector<1x1x32xf32> to vector<8x8x32xf32>
    %105 = arith.mulf %103, %104 : vector<8x8x32xf32>
    %106 = arith.addf %98, %105 : vector<8x8x32xf32>
    %107 = vector.extract_strided_slice %40 {offsets = [0, 4], sizes = [8, 8], strides = [1, 1]} : vector<8x12xf32> to vector<8x8xf32>
    %108 = vector.shape_cast %107 : vector<8x8xf32> to vector<8x8x1xf32>
    %109 = vector.extract_strided_slice %39 {offsets = [4, 0], sizes = [1, 32], strides = [1, 1]} : vector<10x32xf32> to vector<1x32xf32>
    %110 = vector.shape_cast %109 : vector<1x32xf32> to vector<1x1x32xf32>
    %111 = vector.broadcast %108 : vector<8x8x1xf32> to vector<8x8x32xf32>
    %112 = vector.broadcast %110 : vector<1x1x32xf32> to vector<8x8x32xf32>
    %113 = arith.mulf %111, %112 : vector<8x8x32xf32>
    %114 = arith.addf %106, %113 : vector<8x8x32xf32>
    %115 = vector.extract_strided_slice %41 {offsets = [0, 4], sizes = [8, 8], strides = [1, 1]} : vector<8x12xf32> to vector<8x8xf32>
    %116 = vector.shape_cast %115 : vector<8x8xf32> to vector<8x8x1xf32>
    %117 = vector.extract_strided_slice %39 {offsets = [9, 0], sizes = [1, 32], strides = [1, 1]} : vector<10x32xf32> to vector<1x32xf32>
    %118 = vector.shape_cast %117 : vector<1x32xf32> to vector<1x1x32xf32>
    %119 = vector.broadcast %116 : vector<8x8x1xf32> to vector<8x8x32xf32>
    %120 = vector.broadcast %118 : vector<1x1x32xf32> to vector<8x8x32xf32>
    %121 = arith.mulf %119, %120 : vector<8x8x32xf32>
    %122 = arith.addf %114, %121 : vector<8x8x32xf32>
    %c0_23 = arith.constant 0 : index
    %c0_24 = arith.constant 0 : index
    %123 = vector.load %arg6[%c0_23, %c0_24] : memref<32x32xf32, #tpu.memory_space<vmem>>, vector<32x32xf32>
    %cst_25 = arith.constant dense<0.000000e+00> : vector<8x32xf32>
    %124 = tpu.matmul %38, %123, %cst_25 {dimension_numbers = #tpu.dot_dimension_numbers<[1], [0], [0], [1], [0, 0, 1, 1], [], []>} : vector<8x32xf32>, vector<32x32xf32>, vector<8x32xf32> -> vector<8x32xf32>
    %125 = vector.shape_cast %124 : vector<8x32xf32> to vector<8x1x32xf32>
    %126 = vector.broadcast %125 : vector<8x1x32xf32> to vector<8x8x32xf32>
    %127 = arith.addf %122, %126 : vector<8x8x32xf32>
    %c0_26 = arith.constant 0 : index
    %c0_27 = arith.constant 0 : index
    %c0_28 = arith.constant 0 : index
    %128 = vector.load %arg4[%c0_26, %c0_27, %c0_28] : memref<8x8x32xf32, #tpu.memory_space<vmem>>, vector<8x8x32xf32>
    %129 = arith.addf %127, %128 : vector<8x8x32xf32>
    %130 = math.tanh %129 : vector<8x8x32xf32>
    %c0_29 = arith.constant 0 : index
    %c0_30 = arith.constant 0 : index
    %131 = vector.load %arg8[%c0_29, %c0_30] : memref<1x32xf32, #tpu.memory_space<vmem>>, vector<1x32xf32>
    %132 = vector.shape_cast %131 : vector<1x32xf32> to vector<1x1x32xf32>
    %133 = vector.broadcast %132 : vector<1x1x32xf32> to vector<8x8x32xf32>
    %134 = arith.mulf %130, %133 : vector<8x8x32xf32>
    %cst_31 = arith.constant dense<0.000000e+00> : vector<8x8xf32>
    %135 = vector.multi_reduction <add>, %134, %cst_31 [2] : vector<8x8x32xf32> to vector<8x8xf32>
    %cst_32 = arith.constant dense<0xFF800000> : vector<8xf32>
    %136 = vector.multi_reduction <maximumf>, %135, %cst_32 [1] : vector<8x8xf32> to vector<8xf32>
    %137 = vector.shape_cast %136 : vector<8xf32> to vector<8x1xf32>
    %138 = vector.broadcast %137 : vector<8x1xf32> to vector<8x8xf32>
    %139 = arith.subf %135, %138 : vector<8x8xf32>
    %140 = math.exp %139 : vector<8x8xf32>
    %cst_33 = arith.constant dense<0.000000e+00> : vector<8xf32>
    %141 = vector.multi_reduction <add>, %140, %cst_33 [1] : vector<8x8xf32> to vector<8xf32>
    %142 = vector.shape_cast %141 : vector<8xf32> to vector<8x1xf32>
    %143 = vector.broadcast %142 : vector<8x1xf32> to vector<8x8xf32>
    %144 = arith.divf %140, %143 : vector<8x8xf32>
    %145 = vector.shape_cast %144 : vector<8x8xf32> to vector<8x1x8xf32>
    %c0_34 = arith.constant 0 : index
    %c0_35 = arith.constant 0 : index
    %c0_36 = arith.constant 0 : index
    %146 = vector.load %arg3[%c0_34, %c0_35, %c0_36] : memref<8x8x32xf32, #tpu.memory_space<vmem>>, vector<8x8x32xf32>
    "tpu.trace_start"() <{level = 10 : i32, message = "bqt,bte->bqe"}> : () -> ()
    %cst_37 = arith.constant dense<0.000000e+00> : vector<8x1x32xf32>
    %147 = tpu.matmul %145, %146, %cst_37 {dimension_numbers = #tpu.dot_dimension_numbers<[2], [1], [1], [2], [0, 0, 0, 1, 1, 2], [0], [0]>} : vector<8x1x8xf32>, vector<8x8x32xf32>, vector<8x1x32xf32> -> vector<8x1x32xf32>
    "tpu.trace_stop"() : () -> ()
    %148 = vector.shape_cast %147 : vector<8x1x32xf32> to vector<8x32xf32>
    %149 = vector.extract_strided_slice %41 {offsets = [0, 2], sizes = [8, 8], strides = [1, 1]} : vector<8x12xf32> to vector<8x8xf32>
    %150 = arith.addf %149, %144 : vector<8x8xf32>
    %c0_38 = arith.constant 0 : index
    %c0_39 = arith.constant 0 : index
    %151 = vector.load %arg11[%c0_38, %c0_39] : memref<8x32xf32, #tpu.memory_space<vmem>>, vector<8x32xf32>
    tpu.vector_store %arg11[%c0_38, %c0_39], %38 {strides = array<i32>} : memref<8x32xf32, #tpu.memory_space<vmem>>, vector<8x32xf32>,
    %c0_40 = arith.constant 0 : index
    %c0_41 = arith.constant 0 : index
    %152 = vector.load %arg12[%c0_40, %c0_41] : memref<8x32xf32, #tpu.memory_space<vmem>>, vector<8x32xf32>
    tpu.vector_store %arg12[%c0_40, %c0_41], %36 {strides = array<i32>} : memref<8x32xf32, #tpu.memory_space<vmem>>, vector<8x32xf32>,
    %c0_42 = arith.constant 0 : index
    %c0_43 = arith.constant 0 : index
    %153 = vector.load %arg13[%c0_42, %c0_43] : memref<8x32xf32, #tpu.memory_space<vmem>>, vector<8x32xf32>
    tpu.vector_store %arg13[%c0_42, %c0_43], %148 {strides = array<i32>} : memref<8x32xf32, #tpu.memory_space<vmem>>, vector<8x32xf32>,
    %c0_44 = arith.constant 0 : index
    %c2 = arith.constant 2 : index
    %154 = vector.load %arg14[%c0_44, %c2] : memref<8x12xf32, #tpu.memory_space<vmem>>, vector<8x8xf32>
    tpu.vector_store %arg14[%c0_44, %c2], %144 {strides = array<i32>} : memref<8x12xf32, #tpu.memory_space<vmem>>, vector<8x8xf32>,
    %c0_45 = arith.constant 0 : index
    %c2_46 = arith.constant 2 : index
    %155 = vector.load %arg15[%c0_45, %c2_46] : memref<8x12xf32, #tpu.memory_space<vmem>>, vector<8x8xf32>
    tpu.vector_store %arg15[%c0_45, %c2_46], %150 {strides = array<i32>} : memref<8x12xf32, #tpu.memory_space<vmem>>, vector<8x8xf32>,
    %cst_47 = arith.constant 0.000000e+00 : f32
    %156 = vector.broadcast %cst_47 : f32 to vector<8x16xf32>
    %157 = tpu.concatenate %148, %38, %36, %144, %150, %156 in 1 : vector<8x32xf32>, vector<8x32xf32>, vector<8x32xf32>, vector<8x8xf32>, vector<8x8xf32>, vector<8x16xf32> -> vector<8x128xf32>
    %c0_48 = arith.constant 0 : index
    %c0_49 = arith.constant 0 : index
    %c0_50 = arith.constant 0 : index
    %158 = vector.load %arg10[%c0_48, %c0_49, %c0_50] : memref<1x8x128xf32, #tpu.memory_space<vmem>>, vector<1x8x128xf32>
    %159 = vector.shape_cast %158 : vector<1x8x128xf32> to vector<8x128xf32>
    %160 = vector.shape_cast %157 : vector<8x128xf32> to vector<1x8x128xf32>
    tpu.vector_store %arg10[%c0_48, %c0_49, %c0_50], %160 {strides = array<i32>} : memref<1x8x128xf32, #tpu.memory_space<vmem>>, vector<1x8x128xf32>,
    return
  }
  func.func @transform_0(%arg0: i32) -> (i32, i32, i32) {
    %c0_i32 = arith.constant 0 : i32
    %c0_i32_0 = arith.constant 0 : i32
    %c0_i32_1 = arith.constant 0 : i32
    return %arg0, %c0_i32, %c0_i32_0 : i32, i32, i32
  }
  func.func @transform_1(%arg0: i32) -> (i32, i32) {
    %c0_i32 = arith.constant 0 : i32
    %c0_i32_0 = arith.constant 0 : i32
    %c0_i32_1 = arith.constant 0 : i32
    return %c0_i32, %c0_i32_0 : i32, i32
  }
  func.func @transform_2(%arg0: i32) -> (i32, i32, i32) {
    %c0_i32 = arith.constant 0 : i32
    %c0_i32_0 = arith.constant 0 : i32
    %c0_i32_1 = arith.constant 0 : i32
    %c0_i32_2 = arith.constant 0 : i32
    return %c0_i32, %c0_i32_0, %c0_i32_1 : i32, i32, i32
  }
  func.func @transform_3(%arg0: i32) -> (i32, i32, i32) {
    %c0_i32 = arith.constant 0 : i32
    %c0_i32_0 = arith.constant 0 : i32
    %c0_i32_1 = arith.constant 0 : i32
    %c0_i32_2 = arith.constant 0 : i32
    return %c0_i32, %c0_i32_0, %c0_i32_1 : i32, i32, i32
  }
  func.func @transform_4(%arg0: i32) -> (i32, i32) {
    %c0_i32 = arith.constant 0 : i32
    %c0_i32_0 = arith.constant 0 : i32
    %c0_i32_1 = arith.constant 0 : i32
    return %c0_i32, %c0_i32_0 : i32, i32
  }
  func.func @transform_5(%arg0: i32) -> (i32, i32) {
    %c0_i32 = arith.constant 0 : i32
    %c0_i32_0 = arith.constant 0 : i32
    %c0_i32_1 = arith.constant 0 : i32
    return %c0_i32, %c0_i32_0 : i32, i32
  }
  func.func @transform_6(%arg0: i32) -> (i32, i32) {
    %c0_i32 = arith.constant 0 : i32
    %c0_i32_0 = arith.constant 0 : i32
    %c0_i32_1 = arith.constant 0 : i32
    return %c0_i32, %c0_i32_0 : i32, i32
  }
  func.func @transform_7(%arg0: i32) -> (i32, i32) {
    %c0_i32 = arith.constant 0 : i32
    %c0_i32_0 = arith.constant 0 : i32
    %c0_i32_1 = arith.constant 0 : i32
    return %c0_i32, %c0_i32_0 : i32, i32
  }
  func.func @transform_8(%arg0: i32) -> (i32, i32) {
    %c0_i32 = arith.constant 0 : i32
    %c0_i32_0 = arith.constant 0 : i32
    %c0_i32_1 = arith.constant 0 : i32
    return %c0_i32, %c0_i32_0 : i32, i32
  }
  func.func @transform_9(%arg0: i32) -> (i32, i32, i32) {
    %c0_i32 = arith.constant 0 : i32
    %c0_i32_0 = arith.constant 0 : i32
    %c0_i32_1 = arith.constant 0 : i32
    return %arg0, %c0_i32, %c0_i32_0 : i32, i32, i32
  }
}

</mosaic_0001>

<llo_original>
// kernel: tpu_custom_call.1
$region0: #{tpu_custom_call.1}
  #allocation0 [shape = 'u32[]', space=smem, size = 0x4, offset = 0x4, fixed_abs, tag = 'smem constant byte address 0x4 - core index']
  #allocation1 [shape = 'u32[144,128]{1,0:T(1,128)}', space=vmem, size = 0x12000, scoped, tag = 'internal scratch']
  #allocation2 [shape = 'f32[8,32]{1,0:T(8,128)}', space=vmem, size = 0x1000, scoped, tag = 'scratch operand']
  #allocation3 [shape = 'f32[8,32]{1,0:T(8,128)}', space=vmem, size = 0x1000, scoped, tag = 'scratch operand']
  #allocation4 [shape = 'f32[8,32]{1,0:T(8,128)}', space=vmem, size = 0x1000, scoped, tag = 'scratch operand']
  #allocation5 [shape = 'f32[8,12]{1,0:T(8,128)}', space=vmem, size = 0x1000, scoped, tag = 'scratch operand']
  #allocation6 [shape = 'f32[8,12]{1,0:T(8,128)}', space=vmem, size = 0x1000, scoped, tag = 'scratch operand']
  %s0 = inlined_call_operand.hbm [shape: f32[8,8,32], index: 0, kind: input, shape index: {}]
  %s1 = inlined_call_operand.hbm [shape: f32[8,128], index: 1, kind: input, shape index: {}]
  %s2 = inlined_call_operand.hbm [shape: f32[8,8,32], index: 2, kind: input, shape index: {}]
  %s3 = inlined_call_operand.hbm [shape: f32[8,8,32], index: 3, kind: input, shape index: {}]
  %s4 = inlined_call_operand.hbm [shape: f32[96,128], index: 4, kind: input, shape index: {}]
  %s5 = inlined_call_operand.hbm [shape: f32[32,32], index: 5, kind: input, shape index: {}]
  %s6 = inlined_call_operand.vmem [shape: f32[10,32], index: 6, kind: input, shape index: {}]
  %s7 = inlined_call_operand.vmem [shape: f32[1,32], index: 7, kind: input, shape index: {}]
  %s8 = inlined_call_operand.vmem [shape: f32[1,128], index: 8, kind: input, shape index: {}]
  %s9 = inlined_call_operand.hbm [shape: f32[8,8,128], index: 9, kind: output, shape index: {}]
  %s10 = sld [smem:[#allocation0]]
  $region97: #{tpu_custom_call.1} parent=0
    _
  %s12 = ssub.s32 1, %s10
  %s13 = scalar_select 0, %s12, %s10
  $region1: #{tpu_custom_call.1} parent=0
    #allocation7 [shape = 'u8[8192]{0}', space=vmem, size = 0x2000, scoped, tag = 'input window, operand 0']
    #allocation8 [shape = 's32[2]{0}', space=sflag, size = 0x8, scoped, tag = 'scoped memory for tpu_custom_call.1']
    #allocation9 [shape = 's32[2]{0}', space=sflag, size = 0x8, scoped, tag = 'scoped memory for tpu_custom_call.1']
    #allocation10 [shape = 'u8[4096]{0}', space=vmem, size = 0x1000, scoped, tag = 'input window, operand 1, single buffered']
    #allocation11 [shape = 's32[1]{0}', space=sflag, size = 0x4, scoped, tag = 'scoped memory for tpu_custom_call.1']
    #allocation12 [shape = 'u8[32768]{0}', space=vmem, size = 0x8000, scoped, tag = 'input window, operand 2, single buffered']
    #allocation13 [shape = 'u8[32768]{0}', space=vmem, size = 0x8000, scoped, tag = 'input window, operand 3, single buffered']
    #allocation14 [shape = 's32[1]{0}', space=sflag, size = 0x4, scoped, tag = 'scoped memory for tpu_custom_call.1']
    #allocation15 [shape = 'u8[49152]{0}', space=vmem, size = 0xc000, scoped, tag = 'input window, operand 4, single buffered']
    #allocation16 [shape = 'u8[16384]{0}', space=vmem, size = 0x4000, scoped, tag = 'input window, operand 5, single buffered']
    #allocation17 [shape = 's32[1]{0}', space=sflag, size = 0x4, scoped, tag = 'scoped memory for tpu_custom_call.1']
    #allocation18 [shape = 'u8[8192]{0}', space=vmem, size = 0x2000, scoped, tag = 'output window, operand 0']
    %14 = vsyncpa [#allocation8], 0
    %s15 = scalar_lea.sflag [#allocation8], 1
    %16 = vsyncpa %s15, 0
    %17 = vsyncpa [#allocation11], 0
    %18 = vsyncpa [#allocation14], 0
    %19 = vsyncpa [#allocation17], 0
    %20 = vsyncpa [#allocation9], 0
    %s21 = scalar_lea.sflag [#allocation9], 1
    %22 = vsyncpa %s21, 0
    loop: start=0, step=1, limit=10
    $region2: #{tpu_custom_call.1} parent=1 // loop_pre_header
      _
    $region3: #{tpu_custom_call.1} parent=1 // loop_header
      %s24 = sphi 0, %s28
      %p25 = scmp.ge.s32.totalorder %s24, 10
      %s34 = sphi 0, %s36
      %s37 = sphi 0, %s34
      %s38 = sphi 0, %s37
      %s54 = sphi 0, %s38
      %s58 = sphi 0, %s58
      %s60 = sphi 0, %s58
      %s61 = sphi 0, %s60
      %s75 = sphi 0, %s61
      %s79 = sphi 0, %s79
      %s81 = sphi 0, %s79
      %s82 = sphi 0, %s81
      %s96 = sphi 0, %s82
      %s100 = sphi 0, %s100
      %s102 = sphi 0, %s100
      %s103 = sphi 0, %s102
      %s117 = sphi 0, %s103
      %s121 = sphi 0, %s121
      %s123 = sphi 0, %s121
      %s124 = sphi 0, %s123
      %s138 = sphi 0, %s124
      %s142 = sphi 0, %s142
      %s144 = sphi 0, %s142
      %s145 = sphi 0, %s144
      %s159 = sphi 0, %s145
      %s163 = sphi 0, %s163
      %s165 = sphi 0, %s163
      %s166 = sphi 0, %s165
      %s180 = sphi 0, %s166
      %s184 = sphi 0, %s184
      %s186 = sphi 0, %s184
      %s187 = sphi 0, %s186
      %s201 = sphi 0, %s187
      %s205 = sphi 0, %s205
      %s207 = sphi 0, %s205
      %s208 = sphi 0, %s207
      %s222 = sphi 0, %s208
      %s228 = sphi 0, %s230
      %s231 = sphi 0, %s228
      %s232 = sphi 0, %s231
      %s248 = sphi 0, %s232
    $region4: #{tpu_custom_call.1} parent=1 // loop_header_branch
      %27 = sbr.rel (%p25) target = $region8
    $region5: #{tpu_custom_call.1} parent=1 // loop_body
      %s29 = ssub.s32 %s24, 1
      %s30 = ssub.s32 %s24, 2
      %s31 = sadd.s32 %s24, 1
      %s32 = ssub.s32 %s24, %s31
      %p33 = scmp.eq.s32.totalorder %s32, 0
      %s35 = sadd.s32 %s34, 1
      %s36 = scalar_select %p33, %s34, %s35
      %p39 = pneg %p33
      %p40 = scmp.eq.s32.totalorder %s24, 7
      %p41 = por %p39, %p40
      %p42 = scmp.ne.s32.totalorder %s34, %s37
      %p43 = scmp.eq.s32.totalorder %s24, 0
      %p44 = por %p42, %p43
      %p45 = scmp.ne.s32.totalorder %s34, %s37
      %p46 = scmp.eq.s32.totalorder %s29, 7
      %p47 = por %p45, %p46
      %p48 = scmp.ne.s32.totalorder %s37, %s38
      %p49 = scmp.eq.s32.totalorder %s29, 0
      %p50 = por %p48, %p49
      %p51 = scmp.ne.s32.totalorder %s37, %s38
      %p52 = scmp.eq.s32.totalorder %s30, 7
      %p53 = por %p51, %p52
      %p55 = scmp.ne.s32.totalorder %s38, %s54
      %p56 = scmp.eq.s32.totalorder %s30, 0
      %p57 = por %p55, %p56
      %s59 = sadd.s32 %s58, 1
      %p62 = scmp.eq.s32.totalorder %s24, 7
      %p63 = scmp.ne.s32.totalorder %s58, %s60
      %p64 = scmp.eq.s32.totalorder %s24, 0
      %p65 = por %p63, %p64
      %p66 = scmp.ne.s32.totalorder %s58, %s60
      %p67 = scmp.eq.s32.totalorder %s29, 7
      %p68 = por %p66, %p67
      %p69 = scmp.ne.s32.totalorder %s60, %s61
      %p70 = scmp.eq.s32.totalorder %s29, 0
      %p71 = por %p69, %p70
      %p72 = scmp.ne.s32.totalorder %s60, %s61
      %p73 = scmp.eq.s32.totalorder %s30, 7
      %p74 = por %p72, %p73
      %p76 = scmp.ne.s32.totalorder %s61, %s75
      %p77 = scmp.eq.s32.totalorder %s30, 0
      %p78 = por %p76, %p77
      %s80 = sadd.s32 %s79, 1
      %p83 = scmp.eq.s32.totalorder %s24, 7
      %p84 = scmp.ne.s32.totalorder %s79, %s81
      %p85 = scmp.eq.s32.totalorder %s24, 0
      %p86 = por %p84, %p85
      %p87 = scmp.ne.s32.totalorder %s79, %s81
      %p88 = scmp.eq.s32.totalorder %s29, 7
      %p89 = por %p87, %p88
      %p90 = scmp.ne.s32.totalorder %s81, %s82
      %p91 = scmp.eq.s32.totalorder %s29, 0
      %p92 = por %p90, %p91
      %p93 = scmp.ne.s32.totalorder %s81, %s82
      %p94 = scmp.eq.s32.totalorder %s30, 7
      %p95 = por %p93, %p94
      %p97 = scmp.ne.s32.totalorder %s82, %s96
      %p98 = scmp.eq.s32.totalorder %s30, 0
      %p99 = por %p97, %p98
      %s101 = sadd.s32 %s100, 1
      %p104 = scmp.eq.s32.totalorder %s24, 7
      %p105 = scmp.ne.s32.totalorder %s100, %s102
      %p106 = scmp.eq.s32.totalorder %s24, 0
      %p107 = por %p105, %p106
      %p108 = scmp.ne.s32.totalorder %s100, %s102
      %p109 = scmp.eq.s32.totalorder %s29, 7
      %p110 = por %p108, %p109
      %p111 = scmp.ne.s32.totalorder %s102, %s103
      %p112 = scmp.eq.s32.totalorder %s29, 0
      %p113 = por %p111, %p112
      %p114 = scmp.ne.s32.totalorder %s102, %s103
      %p115 = scmp.eq.s32.totalorder %s30, 7
      %p116 = por %p114, %p115
      %p118 = scmp.ne.s32.totalorder %s103, %s117
      %p119 = scmp.eq.s32.totalorder %s30, 0
      %p120 = por %p118, %p119
      %s122 = sadd.s32 %s121, 1
      %p125 = scmp.eq.s32.totalorder %s24, 7
      %p126 = scmp.ne.s32.totalorder %s121, %s123
      %p127 = scmp.eq.s32.totalorder %s24, 0
      %p128 = por %p126, %p127
      %p129 = scmp.ne.s32.totalorder %s121, %s123
      %p130 = scmp.eq.s32.totalorder %s29, 7
      %p131 = por %p129, %p130
      %p132 = scmp.ne.s32.totalorder %s123, %s124
      %p133 = scmp.eq.s32.totalorder %s29, 0
      %p134 = por %p132, %p133
      %p135 = scmp.ne.s32.totalorder %s123, %s124
      %p136 = scmp.eq.s32.totalorder %s30, 7
      %p137 = por %p135, %p136
      %p139 = scmp.ne.s32.totalorder %s124, %s138
      %p140 = scmp.eq.s32.totalorder %s30, 0
      %p141 = por %p139, %p140
      %s143 = sadd.s32 %s142, 1
      %p146 = scmp.eq.s32.totalorder %s24, 7
      %p147 = scmp.ne.s32.totalorder %s142, %s144
      %p148 = scmp.eq.s32.totalorder %s24, 0
      %p149 = por %p147, %p148
      %p150 = scmp.ne.s32.totalorder %s142, %s144
      %p151 = scmp.eq.s32.totalorder %s29, 7
      %p152 = por %p150, %p151
      %p153 = scmp.ne.s32.totalorder %s144, %s145
      %p154 = scmp.eq.s32.totalorder %s29, 0
      %p155 = por %p153, %p154
      %p156 = scmp.ne.s32.totalorder %s144, %s145
      %p157 = scmp.eq.s32.totalorder %s30, 7
      %p158 = por %p156, %p157
      %p160 = scmp.ne.s32.totalorder %s145, %s159
      %p161 = scmp.eq.s32.totalorder %s30, 0
      %p162 = por %p160, %p161
      %s164 = sadd.s32 %s163, 1
      %p167 = scmp.eq.s32.totalorder %s24, 7
      %p168 = scmp.ne.s32.totalorder %s163, %s165
      %p169 = scmp.eq.s32.totalorder %s24, 0
      %p170 = por %p168, %p169
      %p171 = scmp.ne.s32.totalorder %s163, %s165
      %p172 = scmp.eq.s32.totalorder %s29, 7
      %p173 = por %p171, %p172
      %p174 = scmp.ne.s32.totalorder %s165, %s166
      %p175 = scmp.eq.s32.totalorder %s29, 0
      %p176 = por %p174, %p175
      %p177 = scmp.ne.s32.totalorder %s165, %s166
      %p178 = scmp.eq.s32.totalorder %s30, 7
      %p179 = por %p177, %p178
      %p181 = scmp.ne.s32.totalorder %s166, %s180
      %p182 = scmp.eq.s32.totalorder %s30, 0
      %p183 = por %p181, %p182
      %s185 = sadd.s32 %s184, 1
      %p188 = scmp.eq.s32.totalorder %s24, 7
      %p189 = scmp.ne.s32.totalorder %s184, %s186
      %p190 = scmp.eq.s32.totalorder %s24, 0
      %p191 = por %p189, %p190
      %p192 = scmp.ne.s32.totalorder %s184, %s186
      %p193 = scmp.eq.s32.totalorder %s29, 7
      %p194 = por %p192, %p193
      %p195 = scmp.ne.s32.totalorder %s186, %s187
      %p196 = scmp.eq.s32.totalorder %s29, 0
      %p197 = por %p195, %p196
      %p198 = scmp.ne.s32.totalorder %s186, %s187
      %p199 = scmp.eq.s32.totalorder %s30, 7
      %p200 = por %p198, %p199
      %p202 = scmp.ne.s32.totalorder %s187, %s201
      %p203 = scmp.eq.s32.totalorder %s30, 0
      %p204 = por %p202, %p203
      %s206 = sadd.s32 %s205, 1
      %p209 = scmp.eq.s32.totalorder %s24, 7
      %p210 = scmp.ne.s32.totalorder %s205, %s207
      %p211 = scmp.eq.s32.totalorder %s24, 0
      %p212 = por %p210, %p211
      %p213 = scmp.ne.s32.totalorder %s205, %s207
      %p214 = scmp.eq.s32.totalorder %s29, 7
      %p215 = por %p213, %p214
      %p216 = scmp.ne.s32.totalorder %s207, %s208
      %p217 = scmp.eq.s32.totalorder %s29, 0
      %p218 = por %p216, %p217
      %p219 = scmp.ne.s32.totalorder %s207, %s208
      %p220 = scmp.eq.s32.totalorder %s30, 7
      %p221 = por %p219, %p220
      %p223 = scmp.ne.s32.totalorder %s208, %s222
      %p224 = scmp.eq.s32.totalorder %s30, 0
      %p225 = por %p223, %p224
      %s226 = ssub.s32 %s24, %s31
      %p227 = scmp.eq.s32.totalorder %s226, 0
      %s229 = sadd.s32 %s228, 1
      %s230 = scalar_select %p227, %s228, %s229
      %p233 = pneg %p227
      %p234 = scmp.eq.s32.totalorder %s24, 7
      %p235 = por %p233, %p234
      %p236 = scmp.ne.s32.totalorder %s228, %s231
      %p237 = scmp.eq.s32.totalorder %s24, 0
      %p238 = por %p236, %p237
      %p239 = scmp.ne.s32.totalorder %s228, %s231
      %p240 = scmp.eq.s32.totalorder %s29, 7
      %p241 = por %p239, %p240
      %p242 = scmp.ne.s32.totalorder %s231, %s232
      %p243 = scmp.eq.s32.totalorder %s29, 0
      %p244 = por %p242, %p243
      %p245 = scmp.ne.s32.totalorder %s231, %s232
      %p246 = scmp.eq.s32.totalorder %s30, 7
      %p247 = por %p245, %p246
      %p249 = scmp.ne.s32.totalorder %s232, %s248
      %p250 = scmp.eq.s32.totalorder %s30, 0
      %p251 = por %p249, %p250
      %p252 = scmp.le.s32.totalorder 1, %s24
      %p253 = scmp.lt.s32.totalorder %s24, 9
      %p254 = pnand %p252, %p253
      %p255 = pneg %p254
      // Predicated region
      $region9: #{tpu_custom_call.1} parent=5 // pred_check
        _
      $region10: #{tpu_custom_call.1} parent=5 // pred_check_branch
        %257 = sbr.rel (%p254) target = $region12
      $region11: #{tpu_custom_call.1} parent=5 // pred_region
        %s258 = ssub.s32 %s24, 1
        // Predicated region
        $region13: #{tpu_custom_call.1} parent=11 // pred_check
          %p259 = pneg %p71
        $region14: #{tpu_custom_call.1} parent=11 // pred_check_branch
          %261 = sbr.rel (%p259) target = $region16
        $region15: #{tpu_custom_call.1} parent=11 // pred_region
          %s263 = ssub.s32 128, 128
          %264 = vsyncadd [#allocation11], %s263
          %s266 = sshll.u32 [#allocation10], 4
          %s267 = int_to_ptr.vmem [resolvable:$true] %s266
          %269 = dma.hbm_to_vmem [thread:$0]  %s1, 128, %s267, [#allocation11]
        $region16: #{tpu_custom_call.1} parent=11 // pred_fallthru
          _
        // Predicated region
        $region17: #{tpu_custom_call.1} parent=11 // pred_check
          %p270 = pneg %p92
        $region18: #{tpu_custom_call.1} parent=11 // pred_check_branch
          %272 = sbr.rel (%p270) target = $region20
        $region19: #{tpu_custom_call.1} parent=11 // pred_region
          %s274 = ssub.s32 1024, 1024
          %275 = vsyncadd [#allocation11], %s274
          %s276 = sshll.u32 [#allocation12], 4
          %s277 = int_to_ptr.vmem [resolvable:$true] %s276
          %282 = dma.hbm_to_vmem [thread:$0]  %s2, 1024, %s277, [#allocation11], 128, 128, 8
        $region20: #{tpu_custom_call.1} parent=11 // pred_fallthru
          _
        // Predicated region
        $region21: #{tpu_custom_call.1} parent=11 // pred_check
          %p283 = pneg %p113
        $region22: #{tpu_custom_call.1} parent=11 // pred_check_branch
          %285 = sbr.rel (%p283) target = $region24
        $region23: #{tpu_custom_call.1} parent=11 // pred_region
          %s287 = ssub.s32 1024, 1024
          %288 = vsyncadd [#allocation14], %s287
          %s289 = sshll.u32 [#allocation13], 4
          %s290 = int_to_ptr.vmem [resolvable:$true] %s289
          %295 = dma.hbm_to_vmem [thread:$0]  %s3, 1024, %s290, [#allocation14], 128, 128, 8
        $region24: #{tpu_custom_call.1} parent=11 // pred_fallthru
          _
        // Predicated region
        $region25: #{tpu_custom_call.1} parent=11 // pred_check
          %p296 = pneg %p134
        $region26: #{tpu_custom_call.1} parent=11 // pred_check_branch
          %298 = sbr.rel (%p296) target = $region28
        $region27: #{tpu_custom_call.1} parent=11 // pred_region
          %s300 = ssub.s32 1536, 1536
          %301 = vsyncadd [#allocation14], %s300
          %s302 = sshll.u32 [#allocation15], 4
          %s303 = int_to_ptr.vmem [resolvable:$true] %s302
          %308 = dma.hbm_to_vmem [thread:$0]  %s4, 1536, %s303, [#allocation14], 128, 128, 8
        $region28: #{tpu_custom_call.1} parent=11 // pred_fallthru
          _
        // Predicated region
        $region29: #{tpu_custom_call.1} parent=11 // pred_check
          %p309 = pneg %p155
        $region30: #{tpu_custom_call.1} parent=11 // pred_check_branch
          %311 = sbr.rel (%p309) target = $region32
        $region31: #{tpu_custom_call.1} parent=11 // pred_region
          %s313 = ssub.s32 512, 512
          %314 = vsyncadd [#allocation17], %s313
          %s315 = sshll.u32 [#allocation16], 4
          %s316 = int_to_ptr.vmem [resolvable:$true] %s315
          %321 = dma.hbm_to_vmem [thread:$0]  %s5, 512, %s316, [#allocation17], 128, 128, 8
        $region32: #{tpu_custom_call.1} parent=11 // pred_fallthru
          _
        // Predicated region
        $region33: #{tpu_custom_call.1} parent=11 // pred_check
          %p322 = pneg %p176
        $region34: #{tpu_custom_call.1} parent=11 // pred_check_branch
          %324 = sbr.rel (%p322) target = $region36
        $region35: #{tpu_custom_call.1} parent=11 // pred_region
          _
        $region36: #{tpu_custom_call.1} parent=11 // pred_fallthru
          _
        // Predicated region
        $region37: #{tpu_custom_call.1} parent=11 // pred_check
          %p325 = pneg %p197
        $region38: #{tpu_custom_call.1} parent=11 // pred_check_branch
          %327 = sbr.rel (%p325) target = $region40
        $region39: #{tpu_custom_call.1} parent=11 // pred_region
          _
        $region40: #{tpu_custom_call.1} parent=11 // pred_fallthru
          _
        // Predicated region
        $region41: #{tpu_custom_call.1} parent=11 // pred_check
          %p328 = pneg %p218
        $region42: #{tpu_custom_call.1} parent=11 // pred_check_branch
          %330 = sbr.rel (%p328) target = $region44
        $region43: #{tpu_custom_call.1} parent=11 // pred_region
          _
        $region44: #{tpu_custom_call.1} parent=11 // pred_fallthru
          _
      $region12: #{tpu_custom_call.1} parent=5 // pred_fallthru
        _
      %p331 = scmp.lt.s32.totalorder %s24, 8
      // Predicated region
      $region45: #{tpu_custom_call.1} parent=5 // pred_check
        %p332 = pneg %p331
      $region46: #{tpu_custom_call.1} parent=5 // pred_check_branch
        %334 = sbr.rel (%p332) target = $region48
      $region47: #{tpu_custom_call.1} parent=5 // pred_region
        // Predicated region
        $region49: #{tpu_custom_call.1} parent=47 // pred_check
          %p335 = pneg %p44
        $region50: #{tpu_custom_call.1} parent=47 // pred_check_branch
          %337 = sbr.rel (%p335) target = $region52
        $region51: #{tpu_custom_call.1} parent=47 // pred_region
          %s338 = sand.u32 %s34, 1
          %s339 = scalar_lea.sflag [#allocation8], %s338
          %s340 = sand.u32 %s34, 1
          %s341 = smul.addr %s340, 8
          %s342 = scalar_lea.vmem [#allocation7], %s341
          %s344 = ssub.s32 128, 128
          %345 = vsyncadd %s339, %s344
          %s346 = smul.addr %s24, 128
          %s347 = scalar_lea.hbm %s0, %s346
          %s349 = sshll.u32 %s342, 4
          %s350 = int_to_ptr.vmem [resolvable:$true] %s349
          %352 = dma.hbm_to_vmem [thread:$0]  %s347, 128, %s350, %s339
        $region52: #{tpu_custom_call.1} parent=47 // pred_fallthru
          _
      $region48: #{tpu_custom_call.1} parent=5 // pred_fallthru
        _
      %p353 = scmp.le.s32.totalorder 1, %s24
      %p354 = scmp.lt.s32.totalorder %s24, 9
      %p355 = pnand %p353, %p354
      %p356 = pneg %p355
      // Predicated region
      $region53: #{tpu_custom_call.1} parent=5 // pred_check
        _
      $region54: #{tpu_custom_call.1} parent=5 // pred_check_branch
        %358 = sbr.rel (%p355) target = $region56
      $region55: #{tpu_custom_call.1} parent=5 // pred_region
        %s359 = ssub.s32 %s24, 1
        %s360 = sand.u32 %s37, 1
        %s361 = scalar_lea.sflag [#allocation8], %s360
        %s362 = sand.u32 %s37, 1
        %s363 = smul.addr %s362, 8
        %s364 = scalar_lea.vmem [#allocation7], %s363
        // Predicated region
        $region57: #{tpu_custom_call.1} parent=55 // pred_check
          %p365 = pneg %p50
        $region58: #{tpu_custom_call.1} parent=55 // pred_check_branch
          %367 = sbr.rel (%p365) target = $region60
        $region59: #{tpu_custom_call.1} parent=55 // pred_region
          %368 = dma.done %s361, 128
        $region60: #{tpu_custom_call.1} parent=55 // pred_fallthru
          _
        // Predicated region
        $region61: #{tpu_custom_call.1} parent=55 // pred_check
          %p369 = pneg %p71
        $region62: #{tpu_custom_call.1} parent=55 // pred_check_branch
          %371 = sbr.rel (%p369) target = $region64
        $region63: #{tpu_custom_call.1} parent=55 // pred_region
          %372 = dma.done [#allocation11], 128
        $region64: #{tpu_custom_call.1} parent=55 // pred_fallthru
          _
        // Predicated region
        $region65: #{tpu_custom_call.1} parent=55 // pred_check
          %p373 = pneg %p92
        $region66: #{tpu_custom_call.1} parent=55 // pred_check_branch
          %375 = sbr.rel (%p373) target = $region68
        $region67: #{tpu_custom_call.1} parent=55 // pred_region
          %376 = dma.done [#allocation11], 1024
        $region68: #{tpu_custom_call.1} parent=55 // pred_fallthru
          _
        // Predicated region
        $region69: #{tpu_custom_call.1} parent=55 // pred_check
          %p377 = pneg %p113
        $region70: #{tpu_custom_call.1} parent=55 // pred_check_branch
          %379 = sbr.rel (%p377) target = $region72
        $region71: #{tpu_custom_call.1} parent=55 // pred_region
          %380 = dma.done [#allocation14], 1024
        $region72: #{tpu_custom_call.1} parent=55 // pred_fallthru
          _
        // Predicated region
        $region73: #{tpu_custom_call.1} parent=55 // pred_check
          %p381 = pneg %p134
        $region74: #{tpu_custom_call.1} parent=55 // pred_check_branch
          %383 = sbr.rel (%p381) target = $region76
        $region75: #{tpu_custom_call.1} parent=55 // pred_region
          %384 = dma.done [#allocation14], 1536
        $region76: #{tpu_custom_call.1} parent=55 // pred_fallthru
          _
        // Predicated region
        $region77: #{tpu_custom_call.1} parent=55 // pred_check
          %p385 = pneg %p155
        $region78: #{tpu_custom_call.1} parent=55 // pred_check_branch
          %387 = sbr.rel (%p385) target = $region80
        $region79: #{tpu_custom_call.1} parent=55 // pred_region
          %388 = dma.done [#allocation17], 512
        $region80: #{tpu_custom_call.1} parent=55 // pred_fallthru
          _
        %s389 = sand.u32 %s37, 1
        %s390 = scalar_lea.sflag [#allocation8], %s389
        %s391 = sand.u32 %s37, 1
        %s392 = smul.addr %s391, 8
        %s393 = scalar_lea.vmem [#allocation7], %s392
        %p394 = pneg %p50
        %p395 = pneg %p47
        %p396 = pneg %p71
        %p397 = pneg %p68
        %p398 = pneg %p92
        %p399 = pneg %p89
        %p400 = pneg %p113
        %p401 = pneg %p110
        %p402 = pneg %p134
        %p403 = pneg %p131
        %p404 = pneg %p155
        %p405 = pneg %p152
        %p406 = pneg %p176
        %p407 = pneg %p173
        %p408 = pneg %p197
        %p409 = pneg %p194
        %p410 = pneg %p218
        %p411 = pneg %p215
        %p412 = pneg %p244
        %p413 = pneg %p241
        %s414 = sand.u32 %s231, 1
        %s415 = scalar_lea.sflag [#allocation9], %s414
        %s416 = sand.u32 %s231, 1
        %s417 = smul.addr %s416, 8
        %s418 = scalar_lea.vmem [#allocation18], %s417
        %p419 = scmp.eq.s32.totalorder %s29, 0
        // Predicated region
        $region81: #{tpu_custom_call.1} parent=55 // pred_check
          %p420 = pneg %p419
        $region82: #{tpu_custom_call.1} parent=55 // pred_check_branch
          %422 = sbr.rel (%p420) target = $region84
        $region83: #{tpu_custom_call.1} parent=55 // pred_region
          %v423 = vld [vmem:[#allocation10] sm:$0xff]
          %vm424 = vcmask 261120
          %425 = vst.msk [vmem:[#allocation4] sm:$0xff] %vm424, %v423
          %v426 = vld [vmem:[#allocation10] sm:$0xff]
          %428 = vrot.lane.b32.xlu0 %v426, 96
          %v429 = vpop.permute.xlu0 %428
          %431 = vst.msk [vmem:[#allocation2] sm:$0xff] %vm424, %v429
          %v432 = vld [vmem:[#allocation10] sm:$0xff]
          %434 = vrot.lane.b32.xlu0 %v432, 64
          %v435 = vpop.permute.xlu0 %434
          %437 = vst.msk [vmem:[#allocation3] sm:$0xff] %vm424, %v435
          %vm438 = vcmask 97280
          %439 = vst.msk [vmem:[#allocation5] sm:$0xff] %vm438, 0.0
          %440 = vst.msk [vmem:[#allocation6] sm:$0xff] %vm438, 0.0
          %v441 = vld [vmem:[#allocation10] sm:$0xff]
          %443 = vrot.lane.b32.xlu0 %v441, 34
          %v444 = vpop.permute.xlu0 %443
          %vm446 = vcmask 80912
          %447 = vst.msk [vmem:[#allocation5] sm:$0xff] %vm446, %v444
          %v448 = vld [vmem:[#allocation10] sm:$0xff]
          %450 = vrot.lane.b32.xlu0 %v448, 26
          %v451 = vpop.permute.xlu0 %450
          %453 = vst.msk [vmem:[#allocation6] sm:$0xff] %vm446, %v451
        $region84: #{tpu_custom_call.1} parent=55 // pred_fallthru
          _
        %v454 = vld [vmem:[%s364] sm:$0xff]
        %v455 = vld [vmem:[#allocation4] sm:$0xff]
        %v456 = vld [vmem:[#allocation2] sm:$0xff]
        %458 = vrot.lane.b32.xlu0 %v455, 32
        %v459 = vpop.permute.xlu0 %458
        %462 = vrot.lane.b32.xlu0 %v456, 64
        %v463 = vpop.permute.xlu0 %462
        %vm465 = vcmask 261120
        %v466 = vsel %vm465, %v454, %v459
        %vm467 = vcmask 523264
        %v468 = vsel %vm467, %v466, %v463
        %v469 = vld [vmem:[#allocation15] sm:$0xff]
        %v470 = vld [vmem:[#allocation15 + $0x8] sm:$0xff]
        %v471 = vld [vmem:[#allocation15 + $0x10] sm:$0xff]
        %v472 = vld [vmem:[#allocation15 + $0x18] sm:$0xff]
        %v473 = vld [vmem:[#allocation15 + $0x20] sm:$0xff]
        %v474 = vld [vmem:[#allocation15 + $0x28] sm:$0xff]
        %v475 = vld [vmem:[#allocation15 + $0x30] sm:$0xff]
        %v476 = vld [vmem:[#allocation15 + $0x38] sm:$0xff]
        %v477 = vld [vmem:[#allocation15 + $0x40] sm:$0xff]
        %v478 = vld [vmem:[#allocation15 + $0x48] sm:$0xff]
        %v479 = vld [vmem:[#allocation15 + $0x50] sm:$0xff]
        %v480 = vld [vmem:[#allocation15 + $0x58] sm:$0xff]
        %v481 = vld [vmem:[%s8] sm:$0x1]
        %v483 = vlaneseq
        %v484 = vshrl.u32 %v483, 7
        %v485 = vsub.s32 0, %v484
        %v486 = vrot.slane %v481, %v485
        %vm488 = vcmask 785408
        %v490 = vsel %vm488, %v468, 0
        %492 = vmatprep.subr.mxu0 0.0
        %493 = vmatpush1.msra.mxu0 %v469
        %494 = vmatprep.subr.mxu0 0.0
        %495 = vmatpush1.msra.mxu0 %v470
        %496 = vmatprep.subr.mxu0 0.0
        %497 = vmatpush1.msra.mxu0 %v471
        %498 = vmatprep.subr.mxu0 0.0
        %499 = vmatpush1.msra.mxu0 %v472
        %500 = vmatprep.subr.mxu0 0.0
        %501 = vmatpush1.msra.mxu0 %v473
        %502 = vmatprep.subr.mxu0 0.0
        %503 = vmatpush1.msra.mxu0 %v474
        %504 = vmatprep.subr.mxu0 0.0
        %505 = vmatpush1.msra.mxu0 %v475
        %506 = vmatprep.subr.mxu0 0.0
        %507 = vmatpush1.msra.mxu0 %v476
        %508 = vmatprep.subr.mxu0 0.0
        %509 = vmatpush1.msra.mxu0 %v477
        %510 = vmatprep.subr.mxu0 0.0
        %511 = vmatpush1.msra.mxu0 %v478
        %512 = vmatprep.subr.mxu0 0.0
        %513 = vmatpush1.msra.mxu0 %v479
        %514 = vmatprep.subr.mxu0 0.0
        %515 = vmatpush1.msra.mxu0 %v480
        %516 = vmatprep.subr.mxu0 0.0
        %517 = vmatpush1.msra.mxu0 0.0
        %518 = vmatprep.subr.mxu0 0.0
        %519 = vmatpush1.msra.mxu0 0.0
        %520 = vmatprep.subr.mxu0 0.0
        %521 = vmatpush1.msra.mxu0 0.0
        %522 = vmatprep.subr.mxu0 0.0
        %523 = vmatpush1.msra.mxu0 0.0
        %524 = vmatprep.subr.mxu0 0.0
        %525 = vmatpush1.msra.mxu0 0.0
        %526 = vmatprep.subr.mxu0 0.0
        %527 = vmatpush1.msra.mxu0 0.0
        %528 = vmatprep.subr.mxu0 0.0
        %529 = vmatpush1.msra.mxu0 0.0
        %530 = vmatprep.subr.mxu0 0.0
        %531 = vmatpush1.msra.mxu0 0.0
        %532 = vmatprep.subr.mxu0 0.0
        %533 = vmatpush1.msra.mxu0 0.0
        %534 = vmatprep.subr.mxu0 0.0
        %535 = vmatpush1.msra.mxu0 0.0
        %536 = vmatprep.subr.mxu0 0.0
        %537 = vmatpush1.msra.mxu0 0.0
        %538 = vmatprep.subr.mxu0 0.0
        %539 = vmatpush1.msra.mxu0 0.0
        %540 = vmatprep.subr.mxu0 0.0
        %541 = vmatpush1.msra.mxu0 0.0
        %542 = vmatprep.subr.mxu0 0.0
        %543 = vmatpush1.msra.mxu0 0.0
        %544 = vmatprep.subr.mxu0 0.0
        %545 = vmatpush1.msra.mxu0 0.0
        %546 = vmatprep.subr.mxu0 0.0
        %547 = vmatpush1.msra.mxu0 0.0
        %548 = vmatprep.subr.mxu0 0.0
        %549 = vmatpush1.msra.mxu0 0.0
        %550 = vmatprep.subr.mxu0 0.0
        %551 = vmatpush1.msra.mxu0 0.0
        %552 = vmatprep.subr.mxu0 0.0
        %553 = vmatpush1.msra.mxu0 0.0
        %554 = vmatprep.subr.mxu0 0.0
        %555 = vmatpush1.msra.mxu0 0.0
        %556 = vmatprep.mubr.f32.mxu0 0.0
        %557 = vmatmul.mubr.f32.gmra.mrb[0].mxu0 %v490
        %v558 = vpop.f32.mrb[0].mxu0
        %v559 = vadd.f32 %v486, %v558
        %v560 = vpop.f32.mrb[0].mxu0
        %561 = vdwg.mxu0
        %v562 = vxor.u32 %v559, 2147483648
        %v563 = vmul.f32 %v562, 1.442695
        %v564 = vpow.pop %v563
        %v565 = vadd.f32 %v564, 1.0
        %v566 = vrcp.pop %v565
        %v567 = vmul.f32 1.0, %v566
        %v568 = vtanh.pop %v559
        %v569 = vld [vmem:[#allocation3] sm:$0xff]
        %571 = vrot.lane.b32.xlu0 %v569, 32
        %v572 = vpop.permute.xlu0 %571
        %v574 = vmul.f32 %v567, %v572
        %576 = vrot.lane.b32.xlu0 %v568, 64
        %v577 = vpop.permute.xlu0 %576
        %v579 = vmul.f32 %v567, %v577
        %581 = vrot.lane.b32.xlu0 %v579, 32
        %v582 = vpop.permute.xlu0 %581
        %v584 = vadd.f32 %v574, %v582
        %v585 = vtanh.pop %v584
        %587 = vrot.lane.b32.xlu0 %v585, 64
        %v588 = vpop.permute.xlu0 %587
        %v590 = vmul.f32 %v567, %v588
        %v591 = vld [vmem:[%s6] sm:$0xff]
        %v592 = vld [vmem:[%s6 + $0x8] sm:$0x3]
        %v593 = vld [vmem:[#allocation5] sm:$0xff]
        %v594 = vld [vmem:[#allocation6] sm:$0xff]
        %v595 = vlaneseq
        %v596 = vshrl.u32 %v595, 7
        %v597 = vsub.s32 0, %v596
        %v598 = vrot.slane %v593, %v597
        %600 = vbcast.lane.b32.xlu0 %v598, 256
        %v601 = vpop.permute.xlu0 %600
        %v602 = vlaneseq
        %v603 = vshrl.u32 %v602, 7
        %v604 = vsub.s32 1, %v603
        %v605 = vrot.slane %v593, %v604
        %607 = vbcast.lane.b32.xlu0 %v605, 256
        %v608 = vpop.permute.xlu0 %607
        %v609 = vlaneseq
        %v610 = vshrl.u32 %v609, 7
        %v611 = vsub.s32 2, %v610
        %v612 = vrot.slane %v593, %v611
        %614 = vbcast.lane.b32.xlu0 %v612, 256
        %v615 = vpop.permute.xlu0 %614
        %v616 = vlaneseq
        %v617 = vshrl.u32 %v616, 7
        %v618 = vsub.s32 3, %v617
        %v619 = vrot.slane %v593, %v618
        %621 = vbcast.lane.b32.xlu0 %v619, 256
        %v622 = vpop.permute.xlu0 %621
        %v623 = vlaneseq
        %v624 = vshrl.u32 %v623, 7
        %v625 = vsub.s32 4, %v624
        %v626 = vrot.slane %v593, %v625
        %628 = vbcast.lane.b32.xlu0 %v626, 256
        %v629 = vpop.permute.xlu0 %628
        %v630 = vlaneseq
        %v631 = vshrl.u32 %v630, 7
        %v632 = vsub.s32 5, %v631
        %v633 = vrot.slane %v593, %v632
        %635 = vbcast.lane.b32.xlu0 %v633, 256
        %v636 = vpop.permute.xlu0 %635
        %v637 = vlaneseq
        %v638 = vshrl.u32 %v637, 7
        %v639 = vsub.s32 6, %v638
        %v640 = vrot.slane %v593, %v639
        %642 = vbcast.lane.b32.xlu0 %v640, 256
        %v643 = vpop.permute.xlu0 %642
        %v644 = vlaneseq
        %v645 = vshrl.u32 %v644, 7
        %v646 = vsub.s32 7, %v645
        %v647 = vrot.slane %v593, %v646
        %649 = vbcast.lane.b32.xlu0 %v647, 256
        %v650 = vpop.permute.xlu0 %649
        %v651 = vlaneseq
        %v652 = vshrl.u32 %v651, 7
        %v653 = vsub.s32 0, %v652
        %v654 = vrot.slane %v591, %v653
        %v655 = vmul.f32 %v601, %v654
        %v656 = vmul.f32 %v608, %v654
        %v657 = vmul.f32 %v615, %v654
        %v658 = vmul.f32 %v622, %v654
        %v659 = vmul.f32 %v629, %v654
        %v660 = vmul.f32 %v636, %v654
        %v661 = vmul.f32 %v643, %v654
        %v662 = vmul.f32 %v650, %v654
        %v663 = vadd.f32 %v655, 0.0
        %v664 = vadd.f32 %v656, 0.0
        %v665 = vadd.f32 %v657, 0.0
        %v666 = vadd.f32 %v658, 0.0
        %v667 = vadd.f32 %v659, 0.0
        %v668 = vadd.f32 %v660, 0.0
        %v669 = vadd.f32 %v661, 0.0
        %v670 = vadd.f32 %v662, 0.0
        %v671 = vlaneseq
        %v672 = vshrl.u32 %v671, 7
        %v673 = vsub.s32 0, %v672
        %v674 = vrot.slane %v594, %v673
        %676 = vbcast.lane.b32.xlu0 %v674, 256
        %v677 = vpop.permute.xlu0 %676
        %v678 = vlaneseq
        %v679 = vshrl.u32 %v678, 7
        %v680 = vsub.s32 1, %v679
        %v681 = vrot.slane %v594, %v680
        %683 = vbcast.lane.b32.xlu0 %v681, 256
        %v684 = vpop.permute.xlu0 %683
        %v685 = vlaneseq
        %v686 = vshrl.u32 %v685, 7
        %v687 = vsub.s32 2, %v686
        %v688 = vrot.slane %v594, %v687
        %690 = vbcast.lane.b32.xlu0 %v688, 256
        %v691 = vpop.permute.xlu0 %690
        %v692 = vlaneseq
        %v693 = vshrl.u32 %v692, 7
        %v694 = vsub.s32 3, %v693
        %v695 = vrot.slane %v594, %v694
        %697 = vbcast.lane.b32.xlu0 %v695, 256
        %v698 = vpop.permute.xlu0 %697
        %v699 = vlaneseq
        %v700 = vshrl.u32 %v699, 7
        %v701 = vsub.s32 4, %v700
        %v702 = vrot.slane %v594, %v701
        %704 = vbcast.lane.b32.xlu0 %v702, 256
        %v705 = vpop.permute.xlu0 %704
        %v706 = vlaneseq
        %v707 = vshrl.u32 %v706, 7
        %v708 = vsub.s32 5, %v707
        %v709 = vrot.slane %v594, %v708
        %711 = vbcast.lane.b32.xlu0 %v709, 256
        %v712 = vpop.permute.xlu0 %711
        %v713 = vlaneseq
        %v714 = vshrl.u32 %v713, 7
        %v715 = vsub.s32 6, %v714
        %v716 = vrot.slane %v594, %v715
        %718 = vbcast.lane.b32.xlu0 %v716, 256
        %v719 = vpop.permute.xlu0 %718
        %v720 = vlaneseq
        %v721 = vshrl.u32 %v720, 7
        %v722 = vsub.s32 7, %v721
        %v723 = vrot.slane %v594, %v722
        %725 = vbcast.lane.b32.xlu0 %v723, 256
        %v726 = vpop.permute.xlu0 %725
        %v727 = vlaneseq
        %v728 = vshrl.u32 %v727, 7
        %v729 = vsub.s32 5, %v728
        %v730 = vrot.slane %v591, %v729
        %v731 = vmul.f32 %v677, %v730
        %v732 = vmul.f32 %v684, %v730
        %v733 = vmul.f32 %v691, %v730
        %v734 = vmul.f32 %v698, %v730
        %v735 = vmul.f32 %v705, %v730
        %v736 = vmul.f32 %v712, %v730
        %v737 = vmul.f32 %v719, %v730
        %v738 = vmul.f32 %v726, %v730
        %v739 = vadd.f32 %v663, %v731
        %v740 = vadd.f32 %v664, %v732
        %v741 = vadd.f32 %v665, %v733
        %v742 = vadd.f32 %v666, %v734
        %v743 = vadd.f32 %v667, %v735
        %v744 = vadd.f32 %v668, %v736
        %v745 = vadd.f32 %v669, %v737
        %v746 = vadd.f32 %v670, %v738
        %s748 = sor.u32 256, 1
        %749 = vbcast.lane.b32.xlu0 %v598, %s748
        %v750 = vpop.permute.xlu0 %749
        %s752 = sor.u32 256, 1
        %753 = vbcast.lane.b32.xlu0 %v605, %s752
        %v754 = vpop.permute.xlu0 %753
        %s756 = sor.u32 256, 1
        %757 = vbcast.lane.b32.xlu0 %v612, %s756
        %v758 = vpop.permute.xlu0 %757
        %s760 = sor.u32 256, 1
        %761 = vbcast.lane.b32.xlu0 %v619, %s760
        %v762 = vpop.permute.xlu0 %761
        %s764 = sor.u32 256, 1
        %765 = vbcast.lane.b32.xlu0 %v626, %s764
        %v766 = vpop.permute.xlu0 %765
        %s768 = sor.u32 256, 1
        %769 = vbcast.lane.b32.xlu0 %v633, %s768
        %v770 = vpop.permute.xlu0 %769
        %s772 = sor.u32 256, 1
        %773 = vbcast.lane.b32.xlu0 %v640, %s772
        %v774 = vpop.permute.xlu0 %773
        %s776 = sor.u32 256, 1
        %777 = vbcast.lane.b32.xlu0 %v647, %s776
        %v778 = vpop.permute.xlu0 %777
        %v779 = vlaneseq
        %v780 = vshrl.u32 %v779, 7
        %v781 = vsub.s32 1, %v780
        %v782 = vrot.slane %v591, %v781
        %v783 = vmul.f32 %v750, %v782
        %v784 = vmul.f32 %v754, %v782
        %v785 = vmul.f32 %v758, %v782
        %v786 = vmul.f32 %v762, %v782
        %v787 = vmul.f32 %v766, %v782
        %v788 = vmul.f32 %v770, %v782
        %v789 = vmul.f32 %v774, %v782
        %v790 = vmul.f32 %v778, %v782
        %v791 = vadd.f32 %v739, %v783
        %v792 = vadd.f32 %v740, %v784
        %v793 = vadd.f32 %v741, %v785
        %v794 = vadd.f32 %v742, %v786
        %v795 = vadd.f32 %v743, %v787
        %v796 = vadd.f32 %v744, %v788
        %v797 = vadd.f32 %v745, %v789
        %v798 = vadd.f32 %v746, %v790
        %s800 = sor.u32 256, 1
        %801 = vbcast.lane.b32.xlu0 %v674, %s800
        %v802 = vpop.permute.xlu0 %801
        %s804 = sor.u32 256, 1
        %805 = vbcast.lane.b32.xlu0 %v681, %s804
        %v806 = vpop.permute.xlu0 %805
        %s808 = sor.u32 256, 1
        %809 = vbcast.lane.b32.xlu0 %v688, %s808
        %v810 = vpop.permute.xlu0 %809
        %s812 = sor.u32 256, 1
        %813 = vbcast.lane.b32.xlu0 %v695, %s812
        %v814 = vpop.permute.xlu0 %813
        %s816 = sor.u32 256, 1
        %817 = vbcast.lane.b32.xlu0 %v702, %s816
        %v818 = vpop.permute.xlu0 %817
        %s820 = sor.u32 256, 1
        %821 = vbcast.lane.b32.xlu0 %v709, %s820
        %v822 = vpop.permute.xlu0 %821
        %s824 = sor.u32 256, 1
        %825 = vbcast.lane.b32.xlu0 %v716, %s824
        %v826 = vpop.permute.xlu0 %825
        %s828 = sor.u32 256, 1
        %829 = vbcast.lane.b32.xlu0 %v723, %s828
        %v830 = vpop.permute.xlu0 %829
        %v831 = vlaneseq
        %v832 = vshrl.u32 %v831, 7
        %v833 = vsub.s32 6, %v832
        %v834 = vrot.slane %v591, %v833
        %v835 = vmul.f32 %v802, %v834
        %v836 = vmul.f32 %v806, %v834
        %v837 = vmul.f32 %v810, %v834
        %v838 = vmul.f32 %v814, %v834
        %v839 = vmul.f32 %v818, %v834
        %v840 = vmul.f32 %v822, %v834
        %v841 = vmul.f32 %v826, %v834
        %v842 = vmul.f32 %v830, %v834
        %v843 = vadd.f32 %v791, %v835
        %v844 = vadd.f32 %v792, %v836
        %v845 = vadd.f32 %v793, %v837
        %v846 = vadd.f32 %v794, %v838
        %v847 = vadd.f32 %v795, %v839
        %v848 = vadd.f32 %v796, %v840
        %v849 = vadd.f32 %v797, %v841
        %v850 = vadd.f32 %v798, %v842
        %s852 = sor.u32 256, 2
        %853 = vbcast.lane.b32.xlu0 %v598, %s852
        %v854 = vpop.permute.xlu0 %853
        %s856 = sor.u32 256, 2
        %857 = vbcast.lane.b32.xlu0 %v605, %s856
        %v858 = vpop.permute.xlu0 %857
        %s860 = sor.u32 256, 2
        %861 = vbcast.lane.b32.xlu0 %v612, %s860
        %v862 = vpop.permute.xlu0 %861
        %s864 = sor.u32 256, 2
        %865 = vbcast.lane.b32.xlu0 %v619, %s864
        %v866 = vpop.permute.xlu0 %865
        %s868 = sor.u32 256, 2
        %869 = vbcast.lane.b32.xlu0 %v626, %s868
        %v870 = vpop.permute.xlu0 %869
        %s872 = sor.u32 256, 2
        %873 = vbcast.lane.b32.xlu0 %v633, %s872
        %v874 = vpop.permute.xlu0 %873
        %s876 = sor.u32 256, 2
        %877 = vbcast.lane.b32.xlu0 %v640, %s876
        %v878 = vpop.permute.xlu0 %877
        %s880 = sor.u32 256, 2
        %881 = vbcast.lane.b32.xlu0 %v647, %s880
        %v882 = vpop.permute.xlu0 %881
        %v883 = vlaneseq
        %v884 = vshrl.u32 %v883, 7
        %v885 = vsub.s32 2, %v884
        %v886 = vrot.slane %v591, %v885
        %v887 = vmul.f32 %v854, %v886
        %v888 = vmul.f32 %v858, %v886
        %v889 = vmul.f32 %v862, %v886
        %v890 = vmul.f32 %v866, %v886
        %v891 = vmul.f32 %v870, %v886
        %v892 = vmul.f32 %v874, %v886
        %v893 = vmul.f32 %v878, %v886
        %v894 = vmul.f32 %v882, %v886
        %v895 = vadd.f32 %v843, %v887
        %v896 = vadd.f32 %v844, %v888
        %v897 = vadd.f32 %v845, %v889
        %v898 = vadd.f32 %v846, %v890
        %v899 = vadd.f32 %v847, %v891
        %v900 = vadd.f32 %v848, %v892
        %v901 = vadd.f32 %v849, %v893
        %v902 = vadd.f32 %v850, %v894
        %s904 = sor.u32 256, 2
        %905 = vbcast.lane.b32.xlu0 %v674, %s904
        %v906 = vpop.permute.xlu0 %905
        %s908 = sor.u32 256, 2
        %909 = vbcast.lane.b32.xlu0 %v681, %s908
        %v910 = vpop.permute.xlu0 %909
        %s912 = sor.u32 256, 2
        %913 = vbcast.lane.b32.xlu0 %v688, %s912
        %v914 = vpop.permute.xlu0 %913
        %s916 = sor.u32 256, 2
        %917 = vbcast.lane.b32.xlu0 %v695, %s916
        %v918 = vpop.permute.xlu0 %917
        %s920 = sor.u32 256, 2
        %921 = vbcast.lane.b32.xlu0 %v702, %s920
        %v922 = vpop.permute.xlu0 %921
        %s924 = sor.u32 256, 2
        %925 = vbcast.lane.b32.xlu0 %v709, %s924
        %v926 = vpop.permute.xlu0 %925
        %s928 = sor.u32 256, 2
        %929 = vbcast.lane.b32.xlu0 %v716, %s928
        %v930 = vpop.permute.xlu0 %929
        %s932 = sor.u32 256, 2
        %933 = vbcast.lane.b32.xlu0 %v723, %s932
        %v934 = vpop.permute.xlu0 %933
        %v935 = vlaneseq
        %v936 = vshrl.u32 %v935, 7
        %v937 = vsub.s32 7, %v936
        %v938 = vrot.slane %v591, %v937
        %v939 = vmul.f32 %v906, %v938
        %v940 = vmul.f32 %v910, %v938
        %v941 = vmul.f32 %v914, %v938
        %v942 = vmul.f32 %v918, %v938
        %v943 = vmul.f32 %v922, %v938
        %v944 = vmul.f32 %v926, %v938
        %v945 = vmul.f32 %v930, %v938
        %v946 = vmul.f32 %v934, %v938
        %v947 = vadd.f32 %v895, %v939
        %v948 = vadd.f32 %v896, %v940
        %v949 = vadd.f32 %v897, %v941
        %v950 = vadd.f32 %v898, %v942
        %v951 = vadd.f32 %v899, %v943
        %v952 = vadd.f32 %v900, %v944
        %v953 = vadd.f32 %v901, %v945
        %v954 = vadd.f32 %v902, %v946
        %s956 = sor.u32 256, 3
        %957 = vbcast.lane.b32.xlu0 %v598, %s956
        %v958 = vpop.permute.xlu0 %957
        %s960 = sor.u32 256, 3
        %961 = vbcast.lane.b32.xlu0 %v605, %s960
        %v962 = vpop.permute.xlu0 %961
        %s964 = sor.u32 256, 3
        %965 = vbcast.lane.b32.xlu0 %v612, %s964
        %v966 = vpop.permute.xlu0 %965
        %s968 = sor.u32 256, 3
        %969 = vbcast.lane.b32.xlu0 %v619, %s968
        %v970 = vpop.permute.xlu0 %969
        %s972 = sor.u32 256, 3
        %973 = vbcast.lane.b32.xlu0 %v626, %s972
        %v974 = vpop.permute.xlu0 %973
        %s976 = sor.u32 256, 3
        %977 = vbcast.lane.b32.xlu0 %v633, %s976
        %v978 = vpop.permute.xlu0 %977
        %s980 = sor.u32 256, 3
        %981 = vbcast.lane.b32.xlu0 %v640, %s980
        %v982 = vpop.permute.xlu0 %981
        %s984 = sor.u32 256, 3
        %985 = vbcast.lane.b32.xlu0 %v647, %s984
        %v986 = vpop.permute.xlu0 %985
        %v987 = vlaneseq
        %v988 = vshrl.u32 %v987, 7
        %v989 = vsub.s32 3, %v988
        %v990 = vrot.slane %v591, %v989
        %v991 = vmul.f32 %v958, %v990
        %v992 = vmul.f32 %v962, %v990
        %v993 = vmul.f32 %v966, %v990
        %v994 = vmul.f32 %v970, %v990
        %v995 = vmul.f32 %v974, %v990
        %v996 = vmul.f32 %v978, %v990
        %v997 = vmul.f32 %v982, %v990
        %v998 = vmul.f32 %v986, %v990
        %v999 = vadd.f32 %v947, %v991
        %v1000 = vadd.f32 %v948, %v992
        %v1001 = vadd.f32 %v949, %v993
        %v1002 = vadd.f32 %v950, %v994
        %v1003 = vadd.f32 %v951, %v995
        %v1004 = vadd.f32 %v952, %v996
        %v1005 = vadd.f32 %v953, %v997
        %v1006 = vadd.f32 %v954, %v998
        %s1008 = sor.u32 256, 3
        %1009 = vbcast.lane.b32.xlu0 %v674, %s1008
        %v1010 = vpop.permute.xlu0 %1009
        %s1012 = sor.u32 256, 3
        %1013 = vbcast.lane.b32.xlu0 %v681, %s1012
        %v1014 = vpop.permute.xlu0 %1013
        %s1016 = sor.u32 256, 3
        %1017 = vbcast.lane.b32.xlu0 %v688, %s1016
        %v1018 = vpop.permute.xlu0 %1017
        %s1020 = sor.u32 256, 3
        %1021 = vbcast.lane.b32.xlu0 %v695, %s1020
        %v1022 = vpop.permute.xlu0 %1021
        %s1024 = sor.u32 256, 3
        %1025 = vbcast.lane.b32.xlu0 %v702, %s1024
        %v1026 = vpop.permute.xlu0 %1025
        %s1028 = sor.u32 256, 3
        %1029 = vbcast.lane.b32.xlu0 %v709, %s1028
        %v1030 = vpop.permute.xlu0 %1029
        %s1032 = sor.u32 256, 3
        %1033 = vbcast.lane.b32.xlu0 %v716, %s1032
        %v1034 = vpop.permute.xlu0 %1033
        %s1036 = sor.u32 256, 3
        %1037 = vbcast.lane.b32.xlu0 %v723, %s1036
        %v1038 = vpop.permute.xlu0 %1037
        %v1039 = vlaneseq
        %v1040 = vshrl.u32 %v1039, 7
        %v1041 = vsub.s32 0, %v1040
        %v1042 = vrot.slane %v592, %v1041
        %v1043 = vmul.f32 %v1010, %v1042
        %v1044 = vmul.f32 %v1014, %v1042
        %v1045 = vmul.f32 %v1018, %v1042
        %v1046 = vmul.f32 %v1022, %v1042
        %v1047 = vmul.f32 %v1026, %v1042
        %v1048 = vmul.f32 %v1030, %v1042
        %v1049 = vmul.f32 %v1034, %v1042
        %v1050 = vmul.f32 %v1038, %v1042
        %v1051 = vadd.f32 %v999, %v1043
        %v1052 = vadd.f32 %v1000, %v1044
        %v1053 = vadd.f32 %v1001, %v1045
        %v1054 = vadd.f32 %v1002, %v1046
        %v1055 = vadd.f32 %v1003, %v1047
        %v1056 = vadd.f32 %v1004, %v1048
        %v1057 = vadd.f32 %v1005, %v1049
        %v1058 = vadd.f32 %v1006, %v1050
        %s1060 = sor.u32 256, 4
        %1061 = vbcast.lane.b32.xlu0 %v598, %s1060
        %v1062 = vpop.permute.xlu0 %1061
        %s1064 = sor.u32 256, 4
        %1065 = vbcast.lane.b32.xlu0 %v605, %s1064
        %v1066 = vpop.permute.xlu0 %1065
        %s1068 = sor.u32 256, 4
        %1069 = vbcast.lane.b32.xlu0 %v612, %s1068
        %v1070 = vpop.permute.xlu0 %1069
        %s1072 = sor.u32 256, 4
        %1073 = vbcast.lane.b32.xlu0 %v619, %s1072
        %v1074 = vpop.permute.xlu0 %1073
        %s1076 = sor.u32 256, 4
        %1077 = vbcast.lane.b32.xlu0 %v626, %s1076
        %v1078 = vpop.permute.xlu0 %1077
        %s1080 = sor.u32 256, 4
        %1081 = vbcast.lane.b32.xlu0 %v633, %s1080
        %v1082 = vpop.permute.xlu0 %1081
        %s1084 = sor.u32 256, 4
        %1085 = vbcast.lane.b32.xlu0 %v640, %s1084
        %v1086 = vpop.permute.xlu0 %1085
        %s1088 = sor.u32 256, 4
        %1089 = vbcast.lane.b32.xlu0 %v647, %s1088
        %v1090 = vpop.permute.xlu0 %1089
        %v1091 = vlaneseq
        %v1092 = vshrl.u32 %v1091, 7
        %v1093 = vsub.s32 4, %v1092
        %v1094 = vrot.slane %v591, %v1093
        %v1095 = vmul.f32 %v1062, %v1094
        %v1096 = vmul.f32 %v1066, %v1094
        %v1097 = vmul.f32 %v1070, %v1094
        %v1098 = vmul.f32 %v1074, %v1094
        %v1099 = vmul.f32 %v1078, %v1094
        %v1100 = vmul.f32 %v1082, %v1094
        %v1101 = vmul.f32 %v1086, %v1094
        %v1102 = vmul.f32 %v1090, %v1094
        %v1103 = vadd.f32 %v1051, %v1095
        %v1104 = vadd.f32 %v1052, %v1096
        %v1105 = vadd.f32 %v1053, %v1097
        %v1106 = vadd.f32 %v1054, %v1098
        %v1107 = vadd.f32 %v1055, %v1099
        %v1108 = vadd.f32 %v1056, %v1100
        %v1109 = vadd.f32 %v1057, %v1101
        %v1110 = vadd.f32 %v1058, %v1102
        %s1112 = sor.u32 256, 4
        %1113 = vbcast.lane.b32.xlu0 %v674, %s1112
        %v1114 = vpop.permute.xlu0 %1113
        %s1116 = sor.u32 256, 4
        %1117 = vbcast.lane.b32.xlu0 %v681, %s1116
        %v1118 = vpop.permute.xlu0 %1117
        %s1120 = sor.u32 256, 4
        %1121 = vbcast.lane.b32.xlu0 %v688, %s1120
        %v1122 = vpop.permute.xlu0 %1121
        %s1124 = sor.u32 256, 4
        %1125 = vbcast.lane.b32.xlu0 %v695, %s1124
        %v1126 = vpop.permute.xlu0 %1125
        %s1128 = sor.u32 256, 4
        %1129 = vbcast.lane.b32.xlu0 %v702, %s1128
        %v1130 = vpop.permute.xlu0 %1129
        %s1132 = sor.u32 256, 4
        %1133 = vbcast.lane.b32.xlu0 %v709, %s1132
        %v1134 = vpop.permute.xlu0 %1133
        %s1136 = sor.u32 256, 4
        %1137 = vbcast.lane.b32.xlu0 %v716, %s1136
        %v1138 = vpop.permute.xlu0 %1137
        %s1140 = sor.u32 256, 4
        %1141 = vbcast.lane.b32.xlu0 %v723, %s1140
        %v1142 = vpop.permute.xlu0 %1141
        %v1143 = vlaneseq
        %v1144 = vshrl.u32 %v1143, 7
        %v1145 = vsub.s32 1, %v1144
        %v1146 = vrot.slane %v592, %v1145
        %v1147 = vmul.f32 %v1114, %v1146
        %v1148 = vmul.f32 %v1118, %v1146
        %v1149 = vmul.f32 %v1122, %v1146
        %v1150 = vmul.f32 %v1126, %v1146
        %v1151 = vmul.f32 %v1130, %v1146
        %v1152 = vmul.f32 %v1134, %v1146
        %v1153 = vmul.f32 %v1138, %v1146
        %v1154 = vmul.f32 %v1142, %v1146
        %v1155 = vadd.f32 %v1103, %v1147
        %v1156 = vadd.f32 %v1104, %v1148
        %v1157 = vadd.f32 %v1105, %v1149
        %v1158 = vadd.f32 %v1106, %v1150
        %v1159 = vadd.f32 %v1107, %v1151
        %v1160 = vadd.f32 %v1108, %v1152
        %v1161 = vadd.f32 %v1109, %v1153
        %v1162 = vadd.f32 %v1110, %v1154
        %v1163 = vld [vmem:[#allocation16] sm:$0xff]
        %v1164 = vld [vmem:[#allocation16 + $0x8] sm:$0xff]
        %v1165 = vld [vmem:[#allocation16 + $0x10] sm:$0xff]
        %v1166 = vld [vmem:[#allocation16 + $0x18] sm:$0xff]
        %1168 = vrot.lane.b32.xlu0 %v590, 32
        %v1169 = vpop.permute.xlu0 %1168
        %v1170 = vsel %vm465, %v1169, 0
        %1172 = vmatprep.subr.mxu0 0.0
        %1173 = vmatpush1.msra.mxu0 %v1163
        %1174 = vmatprep.subr.mxu0 0.0
        %1175 = vmatpush1.msra.mxu0 %v1164
        %1176 = vmatprep.subr.mxu0 0.0
        %1177 = vmatpush1.msra.mxu0 %v1165
        %1178 = vmatprep.subr.mxu0 0.0
        %1179 = vmatpush1.msra.mxu0 %v1166
        %1180 = vmatprep.subr.mxu0 0.0
        %1181 = vmatpush1.msra.mxu0 0.0
        %1182 = vmatprep.subr.mxu0 0.0
        %1183 = vmatpush1.msra.mxu0 0.0
        %1184 = vmatprep.subr.mxu0 0.0
        %1185 = vmatpush1.msra.mxu0 0.0
        %1186 = vmatprep.subr.mxu0 0.0
        %1187 = vmatpush1.msra.mxu0 0.0
        %1188 = vmatprep.subr.mxu0 0.0
        %1189 = vmatpush1.msra.mxu0 0.0
        %1190 = vmatprep.subr.mxu0 0.0
        %1191 = vmatpush1.msra.mxu0 0.0
        %1192 = vmatprep.subr.mxu0 0.0
        %1193 = vmatpush1.msra.mxu0 0.0
        %1194 = vmatprep.subr.mxu0 0.0
        %1195 = vmatpush1.msra.mxu0 0.0
        %1196 = vmatprep.subr.mxu0 0.0
        %1197 = vmatpush1.msra.mxu0 0.0
        %1198 = vmatprep.subr.mxu0 0.0
        %1199 = vmatpush1.msra.mxu0 0.0
        %1200 = vmatprep.subr.mxu0 0.0
        %1201 = vmatpush1.msra.mxu0 0.0
        %1202 = vmatprep.subr.mxu0 0.0
        %1203 = vmatpush1.msra.mxu0 0.0
        %1204 = vmatprep.subr.mxu0 0.0
        %1205 = vmatpush1.msra.mxu0 0.0
        %1206 = vmatprep.subr.mxu0 0.0
        %1207 = vmatpush1.msra.mxu0 0.0
        %1208 = vmatprep.subr.mxu0 0.0
        %1209 = vmatpush1.msra.mxu0 0.0
        %1210 = vmatprep.subr.mxu0 0.0
        %1211 = vmatpush1.msra.mxu0 0.0
        %1212 = vmatprep.subr.mxu0 0.0
        %1213 = vmatpush1.msra.mxu0 0.0
        %1214 = vmatprep.subr.mxu0 0.0
        %1215 = vmatpush1.msra.mxu0 0.0
        %1216 = vmatprep.subr.mxu0 0.0
        %1217 = vmatpush1.msra.mxu0 0.0
        %1218 = vmatprep.subr.mxu0 0.0
        %1219 = vmatpush1.msra.mxu0 0.0
        %1220 = vmatprep.subr.mxu0 0.0
        %1221 = vmatpush1.msra.mxu0 0.0
        %1222 = vmatprep.subr.mxu0 0.0
        %1223 = vmatpush1.msra.mxu0 0.0
        %1224 = vmatprep.subr.mxu0 0.0
        %1225 = vmatpush1.msra.mxu0 0.0
        %1226 = vmatprep.subr.mxu0 0.0
        %1227 = vmatpush1.msra.mxu0 0.0
        %1228 = vmatprep.subr.mxu0 0.0
        %1229 = vmatpush1.msra.mxu0 0.0
        %1230 = vmatprep.subr.mxu0 0.0
        %1231 = vmatpush1.msra.mxu0 0.0
        %1232 = vmatprep.subr.mxu0 0.0
        %1233 = vmatpush1.msra.mxu0 0.0
        %1234 = vmatprep.subr.mxu0 0.0
        %1235 = vmatpush1.msra.mxu0 0.0
        %1236 = vmatprep.mubr.f32.mxu0 0.0
        %1237 = vmatmul.mubr.f32.gmra.mrb[0].mxu0 %v1170
        %v1238 = vpop.f32.mrb[0].mxu0
        %v1239 = vadd.f32 0.0, %v1238
        %v1240 = vpop.f32.mrb[0].mxu0
        %1241 = vdwg.mxu0
        %v1243 = vcombine.high %v1239, %v1239
        %v1245 = vunpack.c.l.s4 1966171168
        %v1246 = vunpack.c.0.s8 %v1245
        %v1247 = vlaneseq
        %v1248 = vshrl.u32 %v1247, 7
        %v1249 = vsub.s32 %v1246, %v1248
        %v1250 = vrot.slane %v1239, %v1249
        %v1252 = vunpack.c.l.s4 1966171168
        %v1253 = vunpack.c.0.s8 %v1252
        %v1254 = vlaneseq
        %v1255 = vshrl.u32 %v1254, 7
        %v1256 = vsub.s32 %v1253, %v1255
        %v1257 = vrot.slane %v1243, %v1256
        %v1258 = vcombine.high %v1250, %v1250
        %v1259 = vcombine.high %v1257, %v1257
        %v1261 = vunpack.c.l.s4 1966171168
        %v1262 = vunpack.c.0.s8 %v1261
        %v1263 = vlaneseq
        %v1264 = vshrl.u32 %v1263, 7
        %v1265 = vsub.s32 %v1262, %v1264
        %v1266 = vrot.slane %v1250, %v1265
        %v1268 = vunpack.c.l.s4 1966171168
        %v1269 = vunpack.c.0.s8 %v1268
        %v1270 = vlaneseq
        %v1271 = vshrl.u32 %v1270, 7
        %v1272 = vsub.s32 %v1269, %v1271
        %v1273 = vrot.slane %v1257, %v1272
        %v1275 = vunpack.c.l.s4 1966171168
        %v1276 = vunpack.c.0.s8 %v1275
        %v1277 = vlaneseq
        %v1278 = vshrl.u32 %v1277, 7
        %v1279 = vsub.s32 %v1276, %v1278
        %v1280 = vrot.slane %v1258, %v1279
        %v1282 = vunpack.c.l.s4 1966171168
        %v1283 = vunpack.c.0.s8 %v1282
        %v1284 = vlaneseq
        %v1285 = vshrl.u32 %v1284, 7
        %v1286 = vsub.s32 %v1283, %v1285
        %v1287 = vrot.slane %v1259, %v1286
        %v1288 = vcombine.high %v1266, %v1266
        %v1289 = vcombine.high %v1273, %v1273
        %v1290 = vcombine.high %v1280, %v1280
        %v1291 = vcombine.high %v1287, %v1287
        %v1292 = vlaneseq
        %v1293 = vshrl.u32 %v1292, 7
        %v1294 = vsub.s32 0, %v1293
        %v1295 = vrot.slane %v1266, %v1294
        %v1296 = vlaneseq
        %v1297 = vshrl.u32 %v1296, 7
        %v1298 = vsub.s32 0, %v1297
        %v1299 = vrot.slane %v1280, %v1298
        %v1300 = vlaneseq
        %v1301 = vshrl.u32 %v1300, 7
        %v1302 = vsub.s32 0, %v1301
        %v1303 = vrot.slane %v1288, %v1302
        %v1304 = vlaneseq
        %v1305 = vshrl.u32 %v1304, 7
        %v1306 = vsub.s32 0, %v1305
        %v1307 = vrot.slane %v1290, %v1306
        %v1308 = vlaneseq
        %v1309 = vshrl.u32 %v1308, 7
        %v1310 = vsub.s32 0, %v1309
        %v1311 = vrot.slane %v1273, %v1310
        %v1312 = vlaneseq
        %v1313 = vshrl.u32 %v1312, 7
        %v1314 = vsub.s32 0, %v1313
        %v1315 = vrot.slane %v1287, %v1314
        %v1316 = vlaneseq
        %v1317 = vshrl.u32 %v1316, 7
        %v1318 = vsub.s32 0, %v1317
        %v1319 = vrot.slane %v1289, %v1318
        %v1320 = vlaneseq
        %v1321 = vshrl.u32 %v1320, 7
        %v1322 = vsub.s32 0, %v1321
        %v1323 = vrot.slane %v1291, %v1322
        %v1332 = vadd.f32 %v1155, %v1295
        %v1333 = vadd.f32 %v1156, %v1299
        %v1334 = vadd.f32 %v1157, %v1303
        %v1335 = vadd.f32 %v1158, %v1307
        %v1336 = vadd.f32 %v1159, %v1311
        %v1337 = vadd.f32 %v1160, %v1315
        %v1338 = vadd.f32 %v1161, %v1319
        %v1339 = vadd.f32 %v1162, %v1323
        %v1340 = vld [vmem:[#allocation13] sm:$0xff]
        %v1341 = vld [vmem:[#allocation13 + $0x8] sm:$0xff]
        %v1342 = vld [vmem:[#allocation13 + $0x10] sm:$0xff]
        %v1343 = vld [vmem:[#allocation13 + $0x18] sm:$0xff]
        %v1344 = vld [vmem:[#allocation13 + $0x20] sm:$0xff]
        %v1345 = vld [vmem:[#allocation13 + $0x28] sm:$0xff]
        %v1346 = vld [vmem:[#allocation13 + $0x30] sm:$0xff]
        %v1347 = vld [vmem:[#allocation13 + $0x38] sm:$0xff]
        %v1348 = vadd.f32 %v1332, %v1340
        %v1349 = vadd.f32 %v1333, %v1341
        %v1350 = vadd.f32 %v1334, %v1342
        %v1351 = vadd.f32 %v1335, %v1343
        %v1352 = vadd.f32 %v1336, %v1344
        %v1353 = vadd.f32 %v1337, %v1345
        %v1354 = vadd.f32 %v1338, %v1346
        %v1355 = vadd.f32 %v1339, %v1347
        %v1356 = vtanh.pop %v1348
        %v1357 = vtanh.pop %v1349
        %v1358 = vtanh.pop %v1350
        %v1359 = vtanh.pop %v1351
        %v1360 = vtanh.pop %v1352
        %v1361 = vtanh.pop %v1353
        %v1362 = vtanh.pop %v1354
        %v1363 = vtanh.pop %v1355
        %v1364 = vld [vmem:[%s7] sm:$0x1]
        %v1366 = vlaneseq
        %v1367 = vshrl.u32 %v1366, 7
        %v1368 = vsub.s32 0, %v1367
        %v1369 = vrot.slane %v1364, %v1368
        %v1371 = vmul.f32 %v1356, %v1369
        %v1372 = vmul.f32 %v1357, %v1369
        %v1373 = vmul.f32 %v1358, %v1369
        %v1374 = vmul.f32 %v1359, %v1369
        %v1375 = vmul.f32 %v1360, %v1369
        %v1376 = vmul.f32 %v1361, %v1369
        %v1377 = vmul.f32 %v1362, %v1369
        %v1378 = vmul.f32 %v1363, %v1369
        %v1379 = vsel %vm465, %v1371, 0.0
        %1380 = vadd.xlane.f32.xlu0 %v1379
        %v1381 = vpop.xlane.xlu0 %1380
        %v1382 = vsel %vm465, %v1372, 0.0
        %1383 = vadd.xlane.f32.xlu0 %v1382
        %v1384 = vpop.xlane.xlu0 %1383
        %v1385 = vsel %vm465, %v1373, 0.0
        %1386 = vadd.xlane.f32.xlu0 %v1385
        %v1387 = vpop.xlane.xlu0 %1386
        %v1388 = vsel %vm465, %v1374, 0.0
        %1389 = vadd.xlane.f32.xlu0 %v1388
        %v1390 = vpop.xlane.xlu0 %1389
        %v1391 = vsel %vm465, %v1375, 0.0
        %1392 = vadd.xlane.f32.xlu0 %v1391
        %v1393 = vpop.xlane.xlu0 %1392
        %v1394 = vsel %vm465, %v1376, 0.0
        %1395 = vadd.xlane.f32.xlu0 %v1394
        %v1396 = vpop.xlane.xlu0 %1395
        %v1397 = vsel %vm465, %v1377, 0.0
        %1398 = vadd.xlane.f32.xlu0 %v1397
        %v1399 = vpop.xlane.xlu0 %1398
        %v1400 = vsel %vm465, %v1378, 0.0
        %1401 = vadd.xlane.f32.xlu0 %v1400
        %v1402 = vpop.xlane.xlu0 %1401
        %v1411 = vlaneseq
        %v1412 = vand.u32 %v1411, 127
        %v1413 = vlaneseq
        %v1414 = vshrl.u32 %v1413, 7
        %v1415 = vsub.s32 %v1412, %v1414
        %v1416 = vrot.slane %v1381, %v1415
        %v1417 = vlaneseq
        %v1418 = vshrl.u32 %v1417, 7
        %v1419 = vsub.s32 %v1412, %v1418
        %v1420 = vrot.slane %v1384, %v1419
        %v1421 = vlaneseq
        %v1422 = vshrl.u32 %v1421, 7
        %v1423 = vsub.s32 %v1412, %v1422
        %v1424 = vrot.slane %v1387, %v1423
        %v1425 = vlaneseq
        %v1426 = vshrl.u32 %v1425, 7
        %v1427 = vsub.s32 %v1412, %v1426
        %v1428 = vrot.slane %v1390, %v1427
        %v1429 = vlaneseq
        %v1430 = vshrl.u32 %v1429, 7
        %v1431 = vsub.s32 %v1412, %v1430
        %v1432 = vrot.slane %v1393, %v1431
        %v1433 = vlaneseq
        %v1434 = vshrl.u32 %v1433, 7
        %v1435 = vsub.s32 %v1412, %v1434
        %v1436 = vrot.slane %v1396, %v1435
        %v1437 = vlaneseq
        %v1438 = vshrl.u32 %v1437, 7
        %v1439 = vsub.s32 %v1412, %v1438
        %v1440 = vrot.slane %v1399, %v1439
        %v1441 = vlaneseq
        %v1442 = vshrl.u32 %v1441, 7
        %v1443 = vsub.s32 %v1412, %v1442
        %v1444 = vrot.slane %v1402, %v1443
        %vm1445 = vcmask 1041409
        %v1446 = vsel %vm1445, %v1420, %v1416
        %vm1447 = vcmask 1042434
        %v1448 = vsel %vm1447, %v1424, %v1446
        %vm1449 = vcmask 1043459
        %v1450 = vsel %vm1449, %v1428, %v1448
        %vm1451 = vcmask 1044484
        %v1452 = vsel %vm1451, %v1432, %v1450
        %vm1453 = vcmask 1045509
        %v1454 = vsel %vm1453, %v1436, %v1452
        %vm1455 = vcmask 1046534
        %v1456 = vsel %vm1455, %v1440, %v1454
        %vm1457 = vcmask 1047559
        %v1458 = vsel %vm1457, %v1444, %v1456
        %vm1460 = vcmask 64512
        %v1461 = vsel %vm1460, %v1458, -inf
        %1462 = vmax.xlane.f32.xlu0 %v1461
        %v1463 = vpop.xlane.xlu0 %1462
        %v1465 = vlaneseq
        %v1466 = vshrl.u32 %v1465, 7
        %v1467 = vsub.s32 0, %v1466
        %v1468 = vrot.slane %v1463, %v1467
        %v1469 = vlaneseq
        %v1470 = vshrl.u32 %v1469, 7
        %v1471 = vsub.s32 1, %v1470
        %v1472 = vrot.slane %v1463, %v1471
        %v1473 = vlaneseq
        %v1474 = vshrl.u32 %v1473, 7
        %v1475 = vsub.s32 2, %v1474
        %v1476 = vrot.slane %v1463, %v1475
        %v1477 = vlaneseq
        %v1478 = vshrl.u32 %v1477, 7
        %v1479 = vsub.s32 3, %v1478
        %v1480 = vrot.slane %v1463, %v1479
        %v1481 = vlaneseq
        %v1482 = vshrl.u32 %v1481, 7
        %v1483 = vsub.s32 4, %v1482
        %v1484 = vrot.slane %v1463, %v1483
        %v1485 = vlaneseq
        %v1486 = vshrl.u32 %v1485, 7
        %v1487 = vsub.s32 5, %v1486
        %v1488 = vrot.slane %v1463, %v1487
        %v1489 = vlaneseq
        %v1490 = vshrl.u32 %v1489, 7
        %v1491 = vsub.s32 6, %v1490
        %v1492 = vrot.slane %v1463, %v1491
        %v1493 = vlaneseq
        %v1494 = vshrl.u32 %v1493, 7
        %v1495 = vsub.s32 7, %v1494
        %v1496 = vrot.slane %v1463, %v1495
        %v1505 = vsub.f32 %v1381, %v1468
        %v1506 = vsub.f32 %v1384, %v1472
        %v1507 = vsub.f32 %v1387, %v1476
        %v1508 = vsub.f32 %v1390, %v1480
        %v1509 = vsub.f32 %v1393, %v1484
        %v1510 = vsub.f32 %v1396, %v1488
        %v1511 = vsub.f32 %v1399, %v1492
        %v1512 = vsub.f32 %v1402, %v1496
        %v1513 = vmul.f32 %v1505, 1.442695
        %v1514 = vpow.pop %v1513
        %v1515 = vmul.f32 %v1506, 1.442695
        %v1516 = vpow.pop %v1515
        %v1517 = vmul.f32 %v1507, 1.442695
        %v1518 = vpow.pop %v1517
        %v1519 = vmul.f32 %v1508, 1.442695
        %v1520 = vpow.pop %v1519
        %v1521 = vmul.f32 %v1509, 1.442695
        %v1522 = vpow.pop %v1521
        %v1523 = vmul.f32 %v1510, 1.442695
        %v1524 = vpow.pop %v1523
        %v1525 = vmul.f32 %v1511, 1.442695
        %v1526 = vpow.pop %v1525
        %v1527 = vmul.f32 %v1512, 1.442695
        %v1528 = vpow.pop %v1527
        %1537 = vset.pattern.permute.xlu0 0
        %1538 = vperm.xlu0 %1537, %v1514
        %v1539 = vpop.permute.xlu0 %1538
        %1540 = vset.pattern.permute.xlu0 0
        %1541 = vperm.xlu0 %1540, %v1516
        %v1542 = vpop.permute.xlu0 %1541
        %1543 = vset.pattern.permute.xlu0 0
        %1544 = vperm.xlu0 %1543, %v1518
        %v1545 = vpop.permute.xlu0 %1544
        %1546 = vset.pattern.permute.xlu0 0
        %1547 = vperm.xlu0 %1546, %v1520
        %v1548 = vpop.permute.xlu0 %1547
        %1549 = vset.pattern.permute.xlu0 0
        %1550 = vperm.xlu0 %1549, %v1522
        %v1551 = vpop.permute.xlu0 %1550
        %1552 = vset.pattern.permute.xlu0 0
        %1553 = vperm.xlu0 %1552, %v1524
        %v1554 = vpop.permute.xlu0 %1553
        %1555 = vset.pattern.permute.xlu0 0
        %1556 = vperm.xlu0 %1555, %v1526
        %v1557 = vpop.permute.xlu0 %1556
        %1558 = vset.pattern.permute.xlu0 0
        %1559 = vperm.xlu0 %1558, %v1528
        %v1560 = vpop.permute.xlu0 %1559
        %v1561 = vlaneseq
        %v1562 = vshrl.u32 %v1561, 7
        %v1563 = vsub.s32 %v1412, %v1562
        %v1564 = vrot.slane %v1539, %v1563
        %v1565 = vlaneseq
        %v1566 = vshrl.u32 %v1565, 7
        %v1567 = vsub.s32 %v1412, %v1566
        %v1568 = vrot.slane %v1542, %v1567
        %v1569 = vlaneseq
        %v1570 = vshrl.u32 %v1569, 7
        %v1571 = vsub.s32 %v1412, %v1570
        %v1572 = vrot.slane %v1545, %v1571
        %v1573 = vlaneseq
        %v1574 = vshrl.u32 %v1573, 7
        %v1575 = vsub.s32 %v1412, %v1574
        %v1576 = vrot.slane %v1548, %v1575
        %v1577 = vlaneseq
        %v1578 = vshrl.u32 %v1577, 7
        %v1579 = vsub.s32 %v1412, %v1578
        %v1580 = vrot.slane %v1551, %v1579
        %v1581 = vlaneseq
        %v1582 = vshrl.u32 %v1581, 7
        %v1583 = vsub.s32 %v1412, %v1582
        %v1584 = vrot.slane %v1554, %v1583
        %v1585 = vlaneseq
        %v1586 = vshrl.u32 %v1585, 7
        %v1587 = vsub.s32 %v1412, %v1586
        %v1588 = vrot.slane %v1557, %v1587
        %v1589 = vlaneseq
        %v1590 = vshrl.u32 %v1589, 7
        %v1591 = vsub.s32 %v1412, %v1590
        %v1592 = vrot.slane %v1560, %v1591
        %v1593 = vsel %vm1445, %v1568, %v1564
        %v1594 = vsel %vm1447, %v1572, %v1593
        %v1595 = vsel %vm1449, %v1576, %v1594
        %v1596 = vsel %vm1451, %v1580, %v1595
        %v1597 = vsel %vm1453, %v1584, %v1596
        %v1598 = vsel %vm1455, %v1588, %v1597
        %v1599 = vsel %vm1457, %v1592, %v1598
        %v1601 = vsel %vm1460, %v1599, 0.0
        %1602 = vadd.xlane.f32.xlu0 %v1601
        %v1603 = vpop.xlane.xlu0 %1602
        %v1605 = vlaneseq
        %v1606 = vshrl.u32 %v1605, 7
        %v1607 = vsub.s32 0, %v1606
        %v1608 = vrot.slane %v1603, %v1607
        %v1609 = vlaneseq
        %v1610 = vshrl.u32 %v1609, 7
        %v1611 = vsub.s32 1, %v1610
        %v1612 = vrot.slane %v1603, %v1611
        %v1613 = vlaneseq
        %v1614 = vshrl.u32 %v1613, 7
        %v1615 = vsub.s32 2, %v1614
        %v1616 = vrot.slane %v1603, %v1615
        %v1617 = vlaneseq
        %v1618 = vshrl.u32 %v1617, 7
        %v1619 = vsub.s32 3, %v1618
        %v1620 = vrot.slane %v1603, %v1619
        %v1621 = vlaneseq
        %v1622 = vshrl.u32 %v1621, 7
        %v1623 = vsub.s32 4, %v1622
        %v1624 = vrot.slane %v1603, %v1623
        %v1625 = vlaneseq
        %v1626 = vshrl.u32 %v1625, 7
        %v1627 = vsub.s32 5, %v1626
        %v1628 = vrot.slane %v1603, %v1627
        %v1629 = vlaneseq
        %v1630 = vshrl.u32 %v1629, 7
        %v1631 = vsub.s32 6, %v1630
        %v1632 = vrot.slane %v1603, %v1631
        %v1633 = vlaneseq
        %v1634 = vshrl.u32 %v1633, 7
        %v1635 = vsub.s32 7, %v1634
        %v1636 = vrot.slane %v1603, %v1635
        %v1645 = vrcp.pop %v1608
        %v1646 = vmul.f32 %v1514, %v1645
        %v1647 = vrcp.pop %v1612
        %v1648 = vmul.f32 %v1516, %v1647
        %v1649 = vrcp.pop %v1616
        %v1650 = vmul.f32 %v1518, %v1649
        %v1651 = vrcp.pop %v1620
        %v1652 = vmul.f32 %v1520, %v1651
        %v1653 = vrcp.pop %v1624
        %v1654 = vmul.f32 %v1522, %v1653
        %v1655 = vrcp.pop %v1628
        %v1656 = vmul.f32 %v1524, %v1655
        %v1657 = vrcp.pop %v1632
        %v1658 = vmul.f32 %v1526, %v1657
        %v1659 = vrcp.pop %v1636
        %v1660 = vmul.f32 %v1528, %v1659
        %v1661 = vld [vmem:[#allocation12] sm:$0xff]
        %v1662 = vld [vmem:[#allocation12 + $0x8] sm:$0xff]
        %v1663 = vld [vmem:[#allocation12 + $0x10] sm:$0xff]
        %v1664 = vld [vmem:[#allocation12 + $0x18] sm:$0xff]
        %v1665 = vld [vmem:[#allocation12 + $0x20] sm:$0xff]
        %v1666 = vld [vmem:[#allocation12 + $0x28] sm:$0xff]
        %v1667 = vld [vmem:[#allocation12 + $0x30] sm:$0xff]
        %v1668 = vld [vmem:[#allocation12 + $0x38] sm:$0xff]
        %1670 = vset.pattern.permute.xlu0 0
        %1671 = vperm.xlu0 %1670, %v1646
        %v1672 = vpop.permute.xlu0 %1671
        %v1673 = vlaneseq
        %v1674 = vshrl.u32 %v1673, 7
        %v1675 = vsub.s32 %v1412, %v1674
        %v1676 = vrot.slane %v1672, %v1675
        %v1677 = vsel %vm1460, %v1676, 0
        %1679 = vmatprep.subr.mxu0 0.0
        %1680 = vmatpush1.msra.mxu0 %v1661
        %1681 = vmatprep.subr.mxu0 0.0
        %1682 = vmatpush1.msra.mxu0 0.0
        %1683 = vmatprep.subr.mxu0 0.0
        %1684 = vmatpush1.msra.mxu0 0.0
        %1685 = vmatprep.subr.mxu0 0.0
        %1686 = vmatpush1.msra.mxu0 0.0
        %1687 = vmatprep.subr.mxu0 0.0
        %1688 = vmatpush1.msra.mxu0 0.0
        %1689 = vmatprep.subr.mxu0 0.0
        %1690 = vmatpush1.msra.mxu0 0.0
        %1691 = vmatprep.subr.mxu0 0.0
        %1692 = vmatpush1.msra.mxu0 0.0
        %1693 = vmatprep.subr.mxu0 0.0
        %1694 = vmatpush1.msra.mxu0 0.0
        %1695 = vmatprep.subr.mxu0 0.0
        %1696 = vmatpush1.msra.mxu0 0.0
        %1697 = vmatprep.subr.mxu0 0.0
        %1698 = vmatpush1.msra.mxu0 0.0
        %1699 = vmatprep.subr.mxu0 0.0
        %1700 = vmatpush1.msra.mxu0 0.0
        %1701 = vmatprep.subr.mxu0 0.0
        %1702 = vmatpush1.msra.mxu0 0.0
        %1703 = vmatprep.subr.mxu0 0.0
        %1704 = vmatpush1.msra.mxu0 0.0
        %1705 = vmatprep.subr.mxu0 0.0
        %1706 = vmatpush1.msra.mxu0 0.0
        %1707 = vmatprep.subr.mxu0 0.0
        %1708 = vmatpush1.msra.mxu0 0.0
        %1709 = vmatprep.subr.mxu0 0.0
        %1710 = vmatpush1.msra.mxu0 0.0
        %1711 = vmatprep.subr.mxu0 0.0
        %1712 = vmatpush1.msra.mxu0 0.0
        %1713 = vmatprep.subr.mxu0 0.0
        %1714 = vmatpush1.msra.mxu0 0.0
        %1715 = vmatprep.subr.mxu0 0.0
        %1716 = vmatpush1.msra.mxu0 0.0
        %1717 = vmatprep.subr.mxu0 0.0
        %1718 = vmatpush1.msra.mxu0 0.0
        %1719 = vmatprep.subr.mxu0 0.0
        %1720 = vmatpush1.msra.mxu0 0.0
        %1721 = vmatprep.subr.mxu0 0.0
        %1722 = vmatpush1.msra.mxu0 0.0
        %1723 = vmatprep.subr.mxu0 0.0
        %1724 = vmatpush1.msra.mxu0 0.0
        %1725 = vmatprep.subr.mxu0 0.0
        %1726 = vmatpush1.msra.mxu0 0.0
        %1727 = vmatprep.subr.mxu0 0.0
        %1728 = vmatpush1.msra.mxu0 0.0
        %1729 = vmatprep.subr.mxu0 0.0
        %1730 = vmatpush1.msra.mxu0 0.0
        %1731 = vmatprep.subr.mxu0 0.0
        %1732 = vmatpush1.msra.mxu0 0.0
        %1733 = vmatprep.subr.mxu0 0.0
        %1734 = vmatpush1.msra.mxu0 0.0
        %1735 = vmatprep.subr.mxu0 0.0
        %1736 = vmatpush1.msra.mxu0 0.0
        %1737 = vmatprep.subr.mxu0 0.0
        %1738 = vmatpush1.msra.mxu0 0.0
        %1739 = vmatprep.subr.mxu0 0.0
        %1740 = vmatpush1.msra.mxu0 0.0
        %1741 = vmatprep.subr.mxu0 0.0
        %1742 = vmatpush1.msra.mxu0 0.0
        %1743 = vmatprep.mubr.f32.mxu0 0.0
        %1744 = vmatmul.mubr.f32.gmra.mrb[0].mxu0 %v1677
        %v1745 = vpop.f32.mrb[0].mxu0
        %v1746 = vadd.f32 0.0, %v1745
        %v1747 = vpop.f32.mrb[0].mxu0
        %1748 = vdwg.mxu0
        %1750 = vset.pattern.permute.xlu0 0
        %1751 = vperm.xlu0 %1750, %v1648
        %v1752 = vpop.permute.xlu0 %1751
        %v1753 = vlaneseq
        %v1754 = vshrl.u32 %v1753, 7
        %v1755 = vsub.s32 %v1412, %v1754
        %v1756 = vrot.slane %v1752, %v1755
        %v1757 = vsel %vm1460, %v1756, 0
        %1759 = vmatprep.subr.mxu0 0.0
        %1760 = vmatpush1.msra.mxu0 %v1662
        %1761 = vmatprep.subr.mxu0 0.0
        %1762 = vmatpush1.msra.mxu0 0.0
        %1763 = vmatprep.subr.mxu0 0.0
        %1764 = vmatpush1.msra.mxu0 0.0
        %1765 = vmatprep.subr.mxu0 0.0
        %1766 = vmatpush1.msra.mxu0 0.0
        %1767 = vmatprep.subr.mxu0 0.0
        %1768 = vmatpush1.msra.mxu0 0.0
        %1769 = vmatprep.subr.mxu0 0.0
        %1770 = vmatpush1.msra.mxu0 0.0
        %1771 = vmatprep.subr.mxu0 0.0
        %1772 = vmatpush1.msra.mxu0 0.0
        %1773 = vmatprep.subr.mxu0 0.0
        %1774 = vmatpush1.msra.mxu0 0.0
        %1775 = vmatprep.subr.mxu0 0.0
        %1776 = vmatpush1.msra.mxu0 0.0
        %1777 = vmatprep.subr.mxu0 0.0
        %1778 = vmatpush1.msra.mxu0 0.0
        %1779 = vmatprep.subr.mxu0 0.0
        %1780 = vmatpush1.msra.mxu0 0.0
        %1781 = vmatprep.subr.mxu0 0.0
        %1782 = vmatpush1.msra.mxu0 0.0
        %1783 = vmatprep.subr.mxu0 0.0
        %1784 = vmatpush1.msra.mxu0 0.0
        %1785 = vmatprep.subr.mxu0 0.0
        %1786 = vmatpush1.msra.mxu0 0.0
        %1787 = vmatprep.subr.mxu0 0.0
        %1788 = vmatpush1.msra.mxu0 0.0
        %1789 = vmatprep.subr.mxu0 0.0
        %1790 = vmatpush1.msra.mxu0 0.0
        %1791 = vmatprep.subr.mxu0 0.0
        %1792 = vmatpush1.msra.mxu0 0.0
        %1793 = vmatprep.subr.mxu0 0.0
        %1794 = vmatpush1.msra.mxu0 0.0
        %1795 = vmatprep.subr.mxu0 0.0
        %1796 = vmatpush1.msra.mxu0 0.0
        %1797 = vmatprep.subr.mxu0 0.0
        %1798 = vmatpush1.msra.mxu0 0.0
        %1799 = vmatprep.subr.mxu0 0.0
        %1800 = vmatpush1.msra.mxu0 0.0
        %1801 = vmatprep.subr.mxu0 0.0
        %1802 = vmatpush1.msra.mxu0 0.0
        %1803 = vmatprep.subr.mxu0 0.0
        %1804 = vmatpush1.msra.mxu0 0.0
        %1805 = vmatprep.subr.mxu0 0.0
        %1806 = vmatpush1.msra.mxu0 0.0
        %1807 = vmatprep.subr.mxu0 0.0
        %1808 = vmatpush1.msra.mxu0 0.0
        %1809 = vmatprep.subr.mxu0 0.0
        %1810 = vmatpush1.msra.mxu0 0.0
        %1811 = vmatprep.subr.mxu0 0.0
        %1812 = vmatpush1.msra.mxu0 0.0
        %1813 = vmatprep.subr.mxu0 0.0
        %1814 = vmatpush1.msra.mxu0 0.0
        %1815 = vmatprep.subr.mxu0 0.0
        %1816 = vmatpush1.msra.mxu0 0.0
        %1817 = vmatprep.subr.mxu0 0.0
        %1818 = vmatpush1.msra.mxu0 0.0
        %1819 = vmatprep.subr.mxu0 0.0
        %1820 = vmatpush1.msra.mxu0 0.0
        %1821 = vmatprep.subr.mxu0 0.0
        %1822 = vmatpush1.msra.mxu0 0.0
        %1823 = vmatprep.mubr.f32.mxu0 0.0
        %1824 = vmatmul.mubr.f32.gmra.mrb[0].mxu0 %v1757
        %v1825 = vpop.f32.mrb[0].mxu0
        %v1826 = vadd.f32 0.0, %v1825
        %v1827 = vpop.f32.mrb[0].mxu0
        %1828 = vdwg.mxu0
        %1830 = vset.pattern.permute.xlu0 0
        %1831 = vperm.xlu0 %1830, %v1650
        %v1832 = vpop.permute.xlu0 %1831
        %v1833 = vlaneseq
        %v1834 = vshrl.u32 %v1833, 7
        %v1835 = vsub.s32 %v1412, %v1834
        %v1836 = vrot.slane %v1832, %v1835
        %v1837 = vsel %vm1460, %v1836, 0
        %1839 = vmatprep.subr.mxu0 0.0
        %1840 = vmatpush1.msra.mxu0 %v1663
        %1841 = vmatprep.subr.mxu0 0.0
        %1842 = vmatpush1.msra.mxu0 0.0
        %1843 = vmatprep.subr.mxu0 0.0
        %1844 = vmatpush1.msra.mxu0 0.0
        %1845 = vmatprep.subr.mxu0 0.0
        %1846 = vmatpush1.msra.mxu0 0.0
        %1847 = vmatprep.subr.mxu0 0.0
        %1848 = vmatpush1.msra.mxu0 0.0
        %1849 = vmatprep.subr.mxu0 0.0
        %1850 = vmatpush1.msra.mxu0 0.0
        %1851 = vmatprep.subr.mxu0 0.0
        %1852 = vmatpush1.msra.mxu0 0.0
        %1853 = vmatprep.subr.mxu0 0.0
        %1854 = vmatpush1.msra.mxu0 0.0
        %1855 = vmatprep.subr.mxu0 0.0
        %1856 = vmatpush1.msra.mxu0 0.0
        %1857 = vmatprep.subr.mxu0 0.0
        %1858 = vmatpush1.msra.mxu0 0.0
        %1859 = vmatprep.subr.mxu0 0.0
        %1860 = vmatpush1.msra.mxu0 0.0
        %1861 = vmatprep.subr.mxu0 0.0
        %1862 = vmatpush1.msra.mxu0 0.0
        %1863 = vmatprep.subr.mxu0 0.0
        %1864 = vmatpush1.msra.mxu0 0.0
        %1865 = vmatprep.subr.mxu0 0.0
        %1866 = vmatpush1.msra.mxu0 0.0
        %1867 = vmatprep.subr.mxu0 0.0
        %1868 = vmatpush1.msra.mxu0 0.0
        %1869 = vmatprep.subr.mxu0 0.0
        %1870 = vmatpush1.msra.mxu0 0.0
        %1871 = vmatprep.subr.mxu0 0.0
        %1872 = vmatpush1.msra.mxu0 0.0
        %1873 = vmatprep.subr.mxu0 0.0
        %1874 = vmatpush1.msra.mxu0 0.0
        %1875 = vmatprep.subr.mxu0 0.0
        %1876 = vmatpush1.msra.mxu0 0.0
        %1877 = vmatprep.subr.mxu0 0.0
        %1878 = vmatpush1.msra.mxu0 0.0
        %1879 = vmatprep.subr.mxu0 0.0
        %1880 = vmatpush1.msra.mxu0 0.0
        %1881 = vmatprep.subr.mxu0 0.0
        %1882 = vmatpush1.msra.mxu0 0.0
        %1883 = vmatprep.subr.mxu0 0.0
        %1884 = vmatpush1.msra.mxu0 0.0
        %1885 = vmatprep.subr.mxu0 0.0
        %1886 = vmatpush1.msra.mxu0 0.0
        %1887 = vmatprep.subr.mxu0 0.0
        %1888 = vmatpush1.msra.mxu0 0.0
        %1889 = vmatprep.subr.mxu0 0.0
        %1890 = vmatpush1.msra.mxu0 0.0
        %1891 = vmatprep.subr.mxu0 0.0
        %1892 = vmatpush1.msra.mxu0 0.0
        %1893 = vmatprep.subr.mxu0 0.0
        %1894 = vmatpush1.msra.mxu0 0.0
        %1895 = vmatprep.subr.mxu0 0.0
        %1896 = vmatpush1.msra.mxu0 0.0
        %1897 = vmatprep.subr.mxu0 0.0
        %1898 = vmatpush1.msra.mxu0 0.0
        %1899 = vmatprep.subr.mxu0 0.0
        %1900 = vmatpush1.msra.mxu0 0.0
        %1901 = vmatprep.subr.mxu0 0.0
        %1902 = vmatpush1.msra.mxu0 0.0
        %1903 = vmatprep.mubr.f32.mxu0 0.0
        %1904 = vmatmul.mubr.f32.gmra.mrb[0].mxu0 %v1837
        %v1905 = vpop.f32.mrb[0].mxu0
        %v1906 = vadd.f32 0.0, %v1905
        %v1907 = vpop.f32.mrb[0].mxu0
        %1908 = vdwg.mxu0
        %1910 = vset.pattern.permute.xlu0 0
        %1911 = vperm.xlu0 %1910, %v1652
        %v1912 = vpop.permute.xlu0 %1911
        %v1913 = vlaneseq
        %v1914 = vshrl.u32 %v1913, 7
        %v1915 = vsub.s32 %v1412, %v1914
        %v1916 = vrot.slane %v1912, %v1915
        %v1917 = vsel %vm1460, %v1916, 0
        %1919 = vmatprep.subr.mxu0 0.0
        %1920 = vmatpush1.msra.mxu0 %v1664
        %1921 = vmatprep.subr.mxu0 0.0
        %1922 = vmatpush1.msra.mxu0 0.0
        %1923 = vmatprep.subr.mxu0 0.0
        %1924 = vmatpush1.msra.mxu0 0.0
        %1925 = vmatprep.subr.mxu0 0.0
        %1926 = vmatpush1.msra.mxu0 0.0
        %1927 = vmatprep.subr.mxu0 0.0
        %1928 = vmatpush1.msra.mxu0 0.0
        %1929 = vmatprep.subr.mxu0 0.0
        %1930 = vmatpush1.msra.mxu0 0.0
        %1931 = vmatprep.subr.mxu0 0.0
        %1932 = vmatpush1.msra.mxu0 0.0
        %1933 = vmatprep.subr.mxu0 0.0
        %1934 = vmatpush1.msra.mxu0 0.0
        %1935 = vmatprep.subr.mxu0 0.0
        %1936 = vmatpush1.msra.mxu0 0.0
        %1937 = vmatprep.subr.mxu0 0.0
        %1938 = vmatpush1.msra.mxu0 0.0
        %1939 = vmatprep.subr.mxu0 0.0
        %1940 = vmatpush1.msra.mxu0 0.0
        %1941 = vmatprep.subr.mxu0 0.0
        %1942 = vmatpush1.msra.mxu0 0.0
        %1943 = vmatprep.subr.mxu0 0.0
        %1944 = vmatpush1.msra.mxu0 0.0
        %1945 = vmatprep.subr.mxu0 0.0
        %1946 = vmatpush1.msra.mxu0 0.0
        %1947 = vmatprep.subr.mxu0 0.0
        %1948 = vmatpush1.msra.mxu0 0.0
        %1949 = vmatprep.subr.mxu0 0.0
        %1950 = vmatpush1.msra.mxu0 0.0
        %1951 = vmatprep.subr.mxu0 0.0
        %1952 = vmatpush1.msra.mxu0 0.0
        %1953 = vmatprep.subr.mxu0 0.0
        %1954 = vmatpush1.msra.mxu0 0.0
        %1955 = vmatprep.subr.mxu0 0.0
        %1956 = vmatpush1.msra.mxu0 0.0
        %1957 = vmatprep.subr.mxu0 0.0
        %1958 = vmatpush1.msra.mxu0 0.0
        %1959 = vmatprep.subr.mxu0 0.0
        %1960 = vmatpush1.msra.mxu0 0.0
        %1961 = vmatprep.subr.mxu0 0.0
        %1962 = vmatpush1.msra.mxu0 0.0
        %1963 = vmatprep.subr.mxu0 0.0
        %1964 = vmatpush1.msra.mxu0 0.0
        %1965 = vmatprep.subr.mxu0 0.0
        %1966 = vmatpush1.msra.mxu0 0.0
        %1967 = vmatprep.subr.mxu0 0.0
        %1968 = vmatpush1.msra.mxu0 0.0
        %1969 = vmatprep.subr.mxu0 0.0
        %1970 = vmatpush1.msra.mxu0 0.0
        %1971 = vmatprep.subr.mxu0 0.0
        %1972 = vmatpush1.msra.mxu0 0.0
        %1973 = vmatprep.subr.mxu0 0.0
        %1974 = vmatpush1.msra.mxu0 0.0
        %1975 = vmatprep.subr.mxu0 0.0
        %1976 = vmatpush1.msra.mxu0 0.0
        %1977 = vmatprep.subr.mxu0 0.0
        %1978 = vmatpush1.msra.mxu0 0.0
        %1979 = vmatprep.subr.mxu0 0.0
        %1980 = vmatpush1.msra.mxu0 0.0
        %1981 = vmatprep.subr.mxu0 0.0
        %1982 = vmatpush1.msra.mxu0 0.0
        %1983 = vmatprep.mubr.f32.mxu0 0.0
        %1984 = vmatmul.mubr.f32.gmra.mrb[0].mxu0 %v1917
        %v1985 = vpop.f32.mrb[0].mxu0
        %v1986 = vadd.f32 0.0, %v1985
        %v1987 = vpop.f32.mrb[0].mxu0
        %1988 = vdwg.mxu0
        %1990 = vset.pattern.permute.xlu0 0
        %1991 = vperm.xlu0 %1990, %v1654
        %v1992 = vpop.permute.xlu0 %1991
        %v1993 = vlaneseq
        %v1994 = vshrl.u32 %v1993, 7
        %v1995 = vsub.s32 %v1412, %v1994
        %v1996 = vrot.slane %v1992, %v1995
        %v1997 = vsel %vm1460, %v1996, 0
        %1999 = vmatprep.subr.mxu0 0.0
        %2000 = vmatpush1.msra.mxu0 %v1665
        %2001 = vmatprep.subr.mxu0 0.0
        %2002 = vmatpush1.msra.mxu0 0.0
        %2003 = vmatprep.subr.mxu0 0.0
        %2004 = vmatpush1.msra.mxu0 0.0
        %2005 = vmatprep.subr.mxu0 0.0
        %2006 = vmatpush1.msra.mxu0 0.0
        %2007 = vmatprep.subr.mxu0 0.0
        %2008 = vmatpush1.msra.mxu0 0.0
        %2009 = vmatprep.subr.mxu0 0.0
        %2010 = vmatpush1.msra.mxu0 0.0
        %2011 = vmatprep.subr.mxu0 0.0
        %2012 = vmatpush1.msra.mxu0 0.0
        %2013 = vmatprep.subr.mxu0 0.0
        %2014 = vmatpush1.msra.mxu0 0.0
        %2015 = vmatprep.subr.mxu0 0.0
        %2016 = vmatpush1.msra.mxu0 0.0
        %2017 = vmatprep.subr.mxu0 0.0
        %2018 = vmatpush1.msra.mxu0 0.0
        %2019 = vmatprep.subr.mxu0 0.0
        %2020 = vmatpush1.msra.mxu0 0.0
        %2021 = vmatprep.subr.mxu0 0.0
        %2022 = vmatpush1.msra.mxu0 0.0
        %2023 = vmatprep.subr.mxu0 0.0
        %2024 = vmatpush1.msra.mxu0 0.0
        %2025 = vmatprep.subr.mxu0 0.0
        %2026 = vmatpush1.msra.mxu0 0.0
        %2027 = vmatprep.subr.mxu0 0.0
        %2028 = vmatpush1.msra.mxu0 0.0
        %2029 = vmatprep.subr.mxu0 0.0
        %2030 = vmatpush1.msra.mxu0 0.0
        %2031 = vmatprep.subr.mxu0 0.0
        %2032 = vmatpush1.msra.mxu0 0.0
        %2033 = vmatprep.subr.mxu0 0.0
        %2034 = vmatpush1.msra.mxu0 0.0
        %2035 = vmatprep.subr.mxu0 0.0
        %2036 = vmatpush1.msra.mxu0 0.0
        %2037 = vmatprep.subr.mxu0 0.0
        %2038 = vmatpush1.msra.mxu0 0.0
        %2039 = vmatprep.subr.mxu0 0.0
        %2040 = vmatpush1.msra.mxu0 0.0
        %2041 = vmatprep.subr.mxu0 0.0
        %2042 = vmatpush1.msra.mxu0 0.0
        %2043 = vmatprep.subr.mxu0 0.0
        %2044 = vmatpush1.msra.mxu0 0.0
        %2045 = vmatprep.subr.mxu0 0.0
        %2046 = vmatpush1.msra.mxu0 0.0
        %2047 = vmatprep.subr.mxu0 0.0
        %2048 = vmatpush1.msra.mxu0 0.0
        %2049 = vmatprep.subr.mxu0 0.0
        %2050 = vmatpush1.msra.mxu0 0.0
        %2051 = vmatprep.subr.mxu0 0.0
        %2052 = vmatpush1.msra.mxu0 0.0
        %2053 = vmatprep.subr.mxu0 0.0
        %2054 = vmatpush1.msra.mxu0 0.0
        %2055 = vmatprep.subr.mxu0 0.0
        %2056 = vmatpush1.msra.mxu0 0.0
        %2057 = vmatprep.subr.mxu0 0.0
        %2058 = vmatpush1.msra.mxu0 0.0
        %2059 = vmatprep.subr.mxu0 0.0
        %2060 = vmatpush1.msra.mxu0 0.0
        %2061 = vmatprep.subr.mxu0 0.0
        %2062 = vmatpush1.msra.mxu0 0.0
        %2063 = vmatprep.mubr.f32.mxu0 0.0
        %2064 = vmatmul.mubr.f32.gmra.mrb[0].mxu0 %v1997
        %v2065 = vpop.f32.mrb[0].mxu0
        %v2066 = vadd.f32 0.0, %v2065
        %v2067 = vpop.f32.mrb[0].mxu0
        %2068 = vdwg.mxu0
        %2070 = vset.pattern.permute.xlu0 0
        %2071 = vperm.xlu0 %2070, %v1656
        %v2072 = vpop.permute.xlu0 %2071
        %v2073 = vlaneseq
        %v2074 = vshrl.u32 %v2073, 7
        %v2075 = vsub.s32 %v1412, %v2074
        %v2076 = vrot.slane %v2072, %v2075
        %v2077 = vsel %vm1460, %v2076, 0
        %2079 = vmatprep.subr.mxu0 0.0
        %2080 = vmatpush1.msra.mxu0 %v1666
        %2081 = vmatprep.subr.mxu0 0.0
        %2082 = vmatpush1.msra.mxu0 0.0
        %2083 = vmatprep.subr.mxu0 0.0
        %2084 = vmatpush1.msra.mxu0 0.0
        %2085 = vmatprep.subr.mxu0 0.0
        %2086 = vmatpush1.msra.mxu0 0.0
        %2087 = vmatprep.subr.mxu0 0.0
        %2088 = vmatpush1.msra.mxu0 0.0
        %2089 = vmatprep.subr.mxu0 0.0
        %2090 = vmatpush1.msra.mxu0 0.0
        %2091 = vmatprep.subr.mxu0 0.0
        %2092 = vmatpush1.msra.mxu0 0.0
        %2093 = vmatprep.subr.mxu0 0.0
        %2094 = vmatpush1.msra.mxu0 0.0
        %2095 = vmatprep.subr.mxu0 0.0
        %2096 = vmatpush1.msra.mxu0 0.0
        %2097 = vmatprep.subr.mxu0 0.0
        %2098 = vmatpush1.msra.mxu0 0.0
        %2099 = vmatprep.subr.mxu0 0.0
        %2100 = vmatpush1.msra.mxu0 0.0
        %2101 = vmatprep.subr.mxu0 0.0
        %2102 = vmatpush1.msra.mxu0 0.0
        %2103 = vmatprep.subr.mxu0 0.0
        %2104 = vmatpush1.msra.mxu0 0.0
        %2105 = vmatprep.subr.mxu0 0.0
        %2106 = vmatpush1.msra.mxu0 0.0
        %2107 = vmatprep.subr.mxu0 0.0
        %2108 = vmatpush1.msra.mxu0 0.0
        %2109 = vmatprep.subr.mxu0 0.0
        %2110 = vmatpush1.msra.mxu0 0.0
        %2111 = vmatprep.subr.mxu0 0.0
        %2112 = vmatpush1.msra.mxu0 0.0
        %2113 = vmatprep.subr.mxu0 0.0
        %2114 = vmatpush1.msra.mxu0 0.0
        %2115 = vmatprep.subr.mxu0 0.0
        %2116 = vmatpush1.msra.mxu0 0.0
        %2117 = vmatprep.subr.mxu0 0.0
        %2118 = vmatpush1.msra.mxu0 0.0
        %2119 = vmatprep.subr.mxu0 0.0
        %2120 = vmatpush1.msra.mxu0 0.0
        %2121 = vmatprep.subr.mxu0 0.0
        %2122 = vmatpush1.msra.mxu0 0.0
        %2123 = vmatprep.subr.mxu0 0.0
        %2124 = vmatpush1.msra.mxu0 0.0
        %2125 = vmatprep.subr.mxu0 0.0
        %2126 = vmatpush1.msra.mxu0 0.0
        %2127 = vmatprep.subr.mxu0 0.0
        %2128 = vmatpush1.msra.mxu0 0.0
        %2129 = vmatprep.subr.mxu0 0.0
        %2130 = vmatpush1.msra.mxu0 0.0
        %2131 = vmatprep.subr.mxu0 0.0
        %2132 = vmatpush1.msra.mxu0 0.0
        %2133 = vmatprep.subr.mxu0 0.0
        %2134 = vmatpush1.msra.mxu0 0.0
        %2135 = vmatprep.subr.mxu0 0.0
        %2136 = vmatpush1.msra.mxu0 0.0
        %2137 = vmatprep.subr.mxu0 0.0
        %2138 = vmatpush1.msra.mxu0 0.0
        %2139 = vmatprep.subr.mxu0 0.0
        %2140 = vmatpush1.msra.mxu0 0.0
        %2141 = vmatprep.subr.mxu0 0.0
        %2142 = vmatpush1.msra.mxu0 0.0
        %2143 = vmatprep.mubr.f32.mxu0 0.0
        %2144 = vmatmul.mubr.f32.gmra.mrb[0].mxu0 %v2077
        %v2145 = vpop.f32.mrb[0].mxu0
        %v2146 = vadd.f32 0.0, %v2145
        %v2147 = vpop.f32.mrb[0].mxu0
        %2148 = vdwg.mxu0
        %2150 = vset.pattern.permute.xlu0 0
        %2151 = vperm.xlu0 %2150, %v1658
        %v2152 = vpop.permute.xlu0 %2151
        %v2153 = vlaneseq
        %v2154 = vshrl.u32 %v2153, 7
        %v2155 = vsub.s32 %v1412, %v2154
        %v2156 = vrot.slane %v2152, %v2155
        %v2157 = vsel %vm1460, %v2156, 0
        %2159 = vmatprep.subr.mxu0 0.0
        %2160 = vmatpush1.msra.mxu0 %v1667
        %2161 = vmatprep.subr.mxu0 0.0
        %2162 = vmatpush1.msra.mxu0 0.0
        %2163 = vmatprep.subr.mxu0 0.0
        %2164 = vmatpush1.msra.mxu0 0.0
        %2165 = vmatprep.subr.mxu0 0.0
        %2166 = vmatpush1.msra.mxu0 0.0
        %2167 = vmatprep.subr.mxu0 0.0
        %2168 = vmatpush1.msra.mxu0 0.0
        %2169 = vmatprep.subr.mxu0 0.0
        %2170 = vmatpush1.msra.mxu0 0.0
        %2171 = vmatprep.subr.mxu0 0.0
        %2172 = vmatpush1.msra.mxu0 0.0
        %2173 = vmatprep.subr.mxu0 0.0
        %2174 = vmatpush1.msra.mxu0 0.0
        %2175 = vmatprep.subr.mxu0 0.0
        %2176 = vmatpush1.msra.mxu0 0.0
        %2177 = vmatprep.subr.mxu0 0.0
        %2178 = vmatpush1.msra.mxu0 0.0
        %2179 = vmatprep.subr.mxu0 0.0
        %2180 = vmatpush1.msra.mxu0 0.0
        %2181 = vmatprep.subr.mxu0 0.0
        %2182 = vmatpush1.msra.mxu0 0.0
        %2183 = vmatprep.subr.mxu0 0.0
        %2184 = vmatpush1.msra.mxu0 0.0
        %2185 = vmatprep.subr.mxu0 0.0
        %2186 = vmatpush1.msra.mxu0 0.0
        %2187 = vmatprep.subr.mxu0 0.0
        %2188 = vmatpush1.msra.mxu0 0.0
        %2189 = vmatprep.subr.mxu0 0.0
        %2190 = vmatpush1.msra.mxu0 0.0
        %2191 = vmatprep.subr.mxu0 0.0
        %2192 = vmatpush1.msra.mxu0 0.0
        %2193 = vmatprep.subr.mxu0 0.0
        %2194 = vmatpush1.msra.mxu0 0.0
        %2195 = vmatprep.subr.mxu0 0.0
        %2196 = vmatpush1.msra.mxu0 0.0
        %2197 = vmatprep.subr.mxu0 0.0
        %2198 = vmatpush1.msra.mxu0 0.0
        %2199 = vmatprep.subr.mxu0 0.0
        %2200 = vmatpush1.msra.mxu0 0.0
        %2201 = vmatprep.subr.mxu0 0.0
        %2202 = vmatpush1.msra.mxu0 0.0
        %2203 = vmatprep.subr.mxu0 0.0
        %2204 = vmatpush1.msra.mxu0 0.0
        %2205 = vmatprep.subr.mxu0 0.0
        %2206 = vmatpush1.msra.mxu0 0.0
        %2207 = vmatprep.subr.mxu0 0.0
        %2208 = vmatpush1.msra.mxu0 0.0
        %2209 = vmatprep.subr.mxu0 0.0
        %2210 = vmatpush1.msra.mxu0 0.0
        %2211 = vmatprep.subr.mxu0 0.0
        %2212 = vmatpush1.msra.mxu0 0.0
        %2213 = vmatprep.subr.mxu0 0.0
        %2214 = vmatpush1.msra.mxu0 0.0
        %2215 = vmatprep.subr.mxu0 0.0
        %2216 = vmatpush1.msra.mxu0 0.0
        %2217 = vmatprep.subr.mxu0 0.0
        %2218 = vmatpush1.msra.mxu0 0.0
        %2219 = vmatprep.subr.mxu0 0.0
        %2220 = vmatpush1.msra.mxu0 0.0
        %2221 = vmatprep.subr.mxu0 0.0
        %2222 = vmatpush1.msra.mxu0 0.0
        %2223 = vmatprep.mubr.f32.mxu0 0.0
        %2224 = vmatmul.mubr.f32.gmra.mrb[0].mxu0 %v2157
        %v2225 = vpop.f32.mrb[0].mxu0
        %v2226 = vadd.f32 0.0, %v2225
        %v2227 = vpop.f32.mrb[0].mxu0
        %2228 = vdwg.mxu0
        %2230 = vset.pattern.permute.xlu0 0
        %2231 = vperm.xlu0 %2230, %v1660
        %v2232 = vpop.permute.xlu0 %2231
        %v2233 = vlaneseq
        %v2234 = vshrl.u32 %v2233, 7
        %v2235 = vsub.s32 %v1412, %v2234
        %v2236 = vrot.slane %v2232, %v2235
        %v2237 = vsel %vm1460, %v2236, 0
        %2239 = vmatprep.subr.mxu0 0.0
        %2240 = vmatpush1.msra.mxu0 %v1668
        %2241 = vmatprep.subr.mxu0 0.0
        %2242 = vmatpush1.msra.mxu0 0.0
        %2243 = vmatprep.subr.mxu0 0.0
        %2244 = vmatpush1.msra.mxu0 0.0
        %2245 = vmatprep.subr.mxu0 0.0
        %2246 = vmatpush1.msra.mxu0 0.0
        %2247 = vmatprep.subr.mxu0 0.0
        %2248 = vmatpush1.msra.mxu0 0.0
        %2249 = vmatprep.subr.mxu0 0.0
        %2250 = vmatpush1.msra.mxu0 0.0
        %2251 = vmatprep.subr.mxu0 0.0
        %2252 = vmatpush1.msra.mxu0 0.0
        %2253 = vmatprep.subr.mxu0 0.0
        %2254 = vmatpush1.msra.mxu0 0.0
        %2255 = vmatprep.subr.mxu0 0.0
        %2256 = vmatpush1.msra.mxu0 0.0
        %2257 = vmatprep.subr.mxu0 0.0
        %2258 = vmatpush1.msra.mxu0 0.0
        %2259 = vmatprep.subr.mxu0 0.0
        %2260 = vmatpush1.msra.mxu0 0.0
        %2261 = vmatprep.subr.mxu0 0.0
        %2262 = vmatpush1.msra.mxu0 0.0
        %2263 = vmatprep.subr.mxu0 0.0
        %2264 = vmatpush1.msra.mxu0 0.0
        %2265 = vmatprep.subr.mxu0 0.0
        %2266 = vmatpush1.msra.mxu0 0.0
        %2267 = vmatprep.subr.mxu0 0.0
        %2268 = vmatpush1.msra.mxu0 0.0
        %2269 = vmatprep.subr.mxu0 0.0
        %2270 = vmatpush1.msra.mxu0 0.0
        %2271 = vmatprep.subr.mxu0 0.0
        %2272 = vmatpush1.msra.mxu0 0.0
        %2273 = vmatprep.subr.mxu0 0.0
        %2274 = vmatpush1.msra.mxu0 0.0
        %2275 = vmatprep.subr.mxu0 0.0
        %2276 = vmatpush1.msra.mxu0 0.0
        %2277 = vmatprep.subr.mxu0 0.0
        %2278 = vmatpush1.msra.mxu0 0.0
        %2279 = vmatprep.subr.mxu0 0.0
        %2280 = vmatpush1.msra.mxu0 0.0
        %2281 = vmatprep.subr.mxu0 0.0
        %2282 = vmatpush1.msra.mxu0 0.0
        %2283 = vmatprep.subr.mxu0 0.0
        %2284 = vmatpush1.msra.mxu0 0.0
        %2285 = vmatprep.subr.mxu0 0.0
        %2286 = vmatpush1.msra.mxu0 0.0
        %2287 = vmatprep.subr.mxu0 0.0
        %2288 = vmatpush1.msra.mxu0 0.0
        %2289 = vmatprep.subr.mxu0 0.0
        %2290 = vmatpush1.msra.mxu0 0.0
        %2291 = vmatprep.subr.mxu0 0.0
        %2292 = vmatpush1.msra.mxu0 0.0
        %2293 = vmatprep.subr.mxu0 0.0
        %2294 = vmatpush1.msra.mxu0 0.0
        %2295 = vmatprep.subr.mxu0 0.0
        %2296 = vmatpush1.msra.mxu0 0.0
        %2297 = vmatprep.subr.mxu0 0.0
        %2298 = vmatpush1.msra.mxu0 0.0
        %2299 = vmatprep.subr.mxu0 0.0
        %2300 = vmatpush1.msra.mxu0 0.0
        %2301 = vmatprep.subr.mxu0 0.0
        %2302 = vmatpush1.msra.mxu0 0.0
        %2303 = vmatprep.mubr.f32.mxu0 0.0
        %2304 = vmatmul.mubr.f32.gmra.mrb[0].mxu0 %v2237
        %v2305 = vpop.f32.mrb[0].mxu0
        %v2306 = vadd.f32 0.0, %v2305
        %v2307 = vpop.f32.mrb[0].mxu0
        %2308 = vdwg.mxu0
        %v2309 = vadd.s32 %v1412, 4294967294
        %v2310 = vlaneseq
        %v2311 = vshrl.u32 %v2310, 7
        %v2312 = vsub.s32 %v2309, %v2311
        %v2313 = vrot.slane %v1672, %v2312
        %v2314 = vlaneseq
        %v2315 = vshrl.u32 %v2314, 7
        %v2316 = vsub.s32 %v2309, %v2315
        %v2317 = vrot.slane %v1752, %v2316
        %v2318 = vlaneseq
        %v2319 = vshrl.u32 %v2318, 7
        %v2320 = vsub.s32 %v2309, %v2319
        %v2321 = vrot.slane %v1832, %v2320
        %v2322 = vlaneseq
        %v2323 = vshrl.u32 %v2322, 7
        %v2324 = vsub.s32 %v2309, %v2323
        %v2325 = vrot.slane %v1912, %v2324
        %v2326 = vlaneseq
        %v2327 = vshrl.u32 %v2326, 7
        %v2328 = vsub.s32 %v2309, %v2327
        %v2329 = vrot.slane %v1992, %v2328
        %v2330 = vlaneseq
        %v2331 = vshrl.u32 %v2330, 7
        %v2332 = vsub.s32 %v2309, %v2331
        %v2333 = vrot.slane %v2072, %v2332
        %v2334 = vlaneseq
        %v2335 = vshrl.u32 %v2334, 7
        %v2336 = vsub.s32 %v2309, %v2335
        %v2337 = vrot.slane %v2152, %v2336
        %v2338 = vlaneseq
        %v2339 = vshrl.u32 %v2338, 7
        %v2340 = vsub.s32 %v2309, %v2339
        %v2341 = vrot.slane %v2232, %v2340
        %v2342 = vsel %vm1445, %v2317, %v2313
        %v2343 = vsel %vm1447, %v2321, %v2342
        %v2344 = vsel %vm1449, %v2325, %v2343
        %v2345 = vsel %vm1451, %v2329, %v2344
        %v2346 = vsel %vm1453, %v2333, %v2345
        %v2347 = vsel %vm1455, %v2337, %v2346
        %v2348 = vsel %vm1457, %v2341, %v2347
        %v2350 = vadd.f32 %v594, %v2348
        %2352 = vst.msk [vmem:[#allocation2] sm:$0xff] %vm465, %v1169
        %2354 = vrot.lane.b32.xlu0 %v584, 96
        %v2355 = vpop.permute.xlu0 %2354
        %2357 = vst.msk [vmem:[#allocation3] sm:$0xff] %vm465, %v2355
        %v2366 = vrot.slane %v1826, 7
        %v2367 = vsel %vm1445, %v2366, %v1746
        %v2368 = vrot.slane %v1906, 6
        %v2369 = vsel %vm1447, %v2368, %v2367
        %v2370 = vrot.slane %v1986, 5
        %v2371 = vsel %vm1449, %v2370, %v2369
        %v2372 = vrot.slane %v2066, 4
        %v2373 = vsel %vm1451, %v2372, %v2371
        %v2374 = vrot.slane %v2146, 3
        %v2375 = vsel %vm1453, %v2374, %v2373
        %v2376 = vrot.slane %v2226, 2
        %v2377 = vsel %vm1455, %v2376, %v2375
        %v2378 = vrot.slane %v2306, 1
        %v2379 = vsel %vm1457, %v2378, %v2377
        %2381 = vst.msk [vmem:[#allocation4] sm:$0xff] %vm465, %v2379
        %vm2382 = vcmask 80912
        %2383 = vst.msk [vmem:[#allocation5] sm:$0xff] %vm2382, %v2348
        %2384 = vst.msk [vmem:[#allocation6] sm:$0xff] %vm2382, %v2350
        %2385 = vrot.lane.b32.xlu0 %v590, 64
        %v2386 = vpop.permute.xlu0 %2385
        %2388 = vrot.lane.b32.xlu0 %v584, 32
        %v2389 = vpop.permute.xlu0 %2388
        %v2391 = vadd.s32 %v1412, 4294967200
        %v2392 = vlaneseq
        %v2393 = vshrl.u32 %v2392, 7
        %v2394 = vsub.s32 %v2391, %v2393
        %v2395 = vrot.slane %v1672, %v2394
        %v2396 = vlaneseq
        %v2397 = vshrl.u32 %v2396, 7
        %v2398 = vsub.s32 %v2391, %v2397
        %v2399 = vrot.slane %v1752, %v2398
        %v2400 = vlaneseq
        %v2401 = vshrl.u32 %v2400, 7
        %v2402 = vsub.s32 %v2391, %v2401
        %v2403 = vrot.slane %v1832, %v2402
        %v2404 = vlaneseq
        %v2405 = vshrl.u32 %v2404, 7
        %v2406 = vsub.s32 %v2391, %v2405
        %v2407 = vrot.slane %v1912, %v2406
        %v2408 = vlaneseq
        %v2409 = vshrl.u32 %v2408, 7
        %v2410 = vsub.s32 %v2391, %v2409
        %v2411 = vrot.slane %v1992, %v2410
        %v2412 = vlaneseq
        %v2413 = vshrl.u32 %v2412, 7
        %v2414 = vsub.s32 %v2391, %v2413
        %v2415 = vrot.slane %v2072, %v2414
        %v2416 = vlaneseq
        %v2417 = vshrl.u32 %v2416, 7
        %v2418 = vsub.s32 %v2391, %v2417
        %v2419 = vrot.slane %v2152, %v2418
        %v2420 = vlaneseq
        %v2421 = vshrl.u32 %v2420, 7
        %v2422 = vsub.s32 %v2391, %v2421
        %v2423 = vrot.slane %v2232, %v2422
        %v2424 = vsel %vm1445, %v2399, %v2395
        %v2425 = vsel %vm1447, %v2403, %v2424
        %v2426 = vsel %vm1449, %v2407, %v2425
        %v2427 = vsel %vm1451, %v2411, %v2426
        %v2428 = vsel %vm1453, %v2415, %v2427
        %v2429 = vsel %vm1455, %v2419, %v2428
        %v2430 = vsel %vm1457, %v2423, %v2429
        %2433 = vrot.lane.b32.xlu0 %v2350, 102
        %v2434 = vpop.permute.xlu0 %2433
        %v2436 = vsel %vm465, %v2379, %v2386
        %v2437 = vsel %vm467, %v2436, %v2389
        %v2438 = vsel %vm488, %v2437, %v2430
        %vm2439 = vcmask 850944
        %v2440 = vsel %vm2439, %v2438, %v2434
        %vm2441 = vcmask 916480
        %v2442 = vsel %vm2441, %v2440, 0.0
        %2443 = vst [vmem:[%s418] sm:$0xff] %v2442
        %s2444 = sand.u32 %s231, 1
        %s2445 = scalar_lea.sflag [#allocation9], %s2444
        %s2446 = sand.u32 %s231, 1
        %s2447 = smul.addr %s2446, 8
        %s2448 = scalar_lea.vmem [#allocation18], %s2447
        // Predicated region
        $region85: #{tpu_custom_call.1} parent=55 // pred_check
          %p2449 = pneg %p241
        $region86: #{tpu_custom_call.1} parent=55 // pred_check_branch
          %2451 = sbr.rel (%p2449) target = $region88
        $region87: #{tpu_custom_call.1} parent=55 // pred_region
          %s2453 = ssub.s32 128, 128
          %2454 = vsyncadd %s2445, %s2453
          %s2455 = smul.addr %s29, 128
          %s2456 = scalar_lea.hbm %s9, %s2455
          %s2458 = sshll.u32 %s2448, 4
          %s2459 = int_to_ptr.vmem [resolvable:$true] %s2458
          %2461 = dma.vmem_to_hbm [thread:$0]  %s2459, 128, %s2456, %s2445
        $region88: #{tpu_custom_call.1} parent=55 // pred_fallthru
          _
      $region56: #{tpu_custom_call.1} parent=5 // pred_fallthru
        _
      %p2462 = scmp.le.s32.totalorder 2, %s24
      // Predicated region
      $region89: #{tpu_custom_call.1} parent=5 // pred_check
        %p2463 = pneg %p2462
      $region90: #{tpu_custom_call.1} parent=5 // pred_check_branch
        %2465 = sbr.rel (%p2463) target = $region92
      $region91: #{tpu_custom_call.1} parent=5 // pred_region
        %s2466 = ssub.s32 %s24, 2
        // Predicated region
        $region93: #{tpu_custom_call.1} parent=91 // pred_check
          %p2467 = pneg %p247
        $region94: #{tpu_custom_call.1} parent=91 // pred_check_branch
          %2469 = sbr.rel (%p2467) target = $region96
        $region95: #{tpu_custom_call.1} parent=91 // pred_region
          %s2470 = sand.u32 %s232, 1
          %s2471 = scalar_lea.sflag [#allocation9], %s2470
          %s2472 = sand.u32 %s232, 1
          %s2473 = smul.addr %s2472, 8
          %s2474 = scalar_lea.vmem [#allocation18], %s2473
          %2475 = dma.done %s2471, 128
        $region96: #{tpu_custom_call.1} parent=91 // pred_fallthru
          _
      $region92: #{tpu_custom_call.1} parent=5 // pred_fallthru
        _
    $region6: #{tpu_custom_call.1} parent=1 // loop_footer
      %s28 = sadd.s32 1, %s24
    $region7: #{tpu_custom_call.1} parent=1 // loop_footer_branch
      %23 = sbr.rel target = $region3
    $region8: #{tpu_custom_call.1} parent=1 // loop_exit
      _
    %2476 = vsyncpa [#allocation8], 1
    %s2477 = scalar_lea.sflag [#allocation8], 1
    %2478 = vsyncpa %s2477, 1
    %2479 = vsyncpa [#allocation11], 1
    %2480 = vsyncpa [#allocation14], 1
    %2481 = vsyncpa [#allocation17], 1
    %2482 = vsyncpa [#allocation9], 1
    %s2483 = scalar_lea.sflag [#allocation9], 1
    %2484 = vsyncpa %s2483, 1

</llo_original>
